<compile_context>
chip_gen: v6e
topology: v6e:2x2x1
jax: 0.10.0
libtpu: 0.0.40
codegen_flags: <defaults>
</compile_context>

<pallas_src>
import jax
import jax.numpy as jnp
from jax.experimental import pallas as pl
from jax.experimental.pallas import tpu as pltpu


_LRELU_SLOPE = 0.2
_VMEM_LIMIT_BYTES = 32 * 1024 * 1024   # fits v5e/v6e/v7x scoped VMEM comfortably


# ---------------------------------------------------------------------------
# Pallas kernels
# ---------------------------------------------------------------------------
def _gemm_bias_lrelu_kernel(x_ref, w_ref, b_ref, o_ref):
    # bf16 x / w -> MXU with f32 accumulation; bias + LeakyReLU epilogue in f32.
    y = jnp.dot(x_ref[...], w_ref[...], preferred_element_type=jnp.float32)
    y = y + b_ref[...]                                    # (TM, N) + (1, N)
    o_ref[...] = jnp.where(y > 0, y, _LRELU_SLOPE * y).astype(o_ref.dtype)


def _small_k_bias_lrelu_kernel(x_ref, w_ref, b_ref, o_ref):
    # First conv layer: K = Cin*9 = 9. An MXU call would be almost entirely
    # K-padding, so do an unrolled VPU broadcast-accumulate (f32) instead.
    x = x_ref[...].astype(jnp.float32)                    # (TM, K)
    w = w_ref[...].astype(jnp.float32)                    # (K, N)
    tm = x_ref.shape[0]
    n = w_ref.shape[1]
    y = jnp.broadcast_to(b_ref[...], (tm, n))
    for k in range(x_ref.shape[1]):                       # static unroll (K=9)
        y = y + x[:, k:k + 1] * w[k:k + 1, :]
    o_ref[...] = jnp.where(y > 0, y, _LRELU_SLOPE * y).astype(o_ref.dtype)


def _head_sigmoid_kernel(x_ref, w_ref, b_ref, o_ref):
    # Output computed as a (1, B) row so the batch sits on lanes (lane-dense
    # store) instead of a (B, 1) column of masked partial stores.
    y = jax.lax.dot_general(
        w_ref[...], x_ref[...],
        dimension_numbers=(((1,), (1,)), ((), ())),
        preferred_element_type=jnp.float32)               # (1, B)
    y = y + b_ref[...]                                    # (1, 1) broadcast
    o_ref[...] = jax.nn.sigmoid(y)


# ---------------------------------------------------------------------------
# Fused GEMM wrappers (tiled over rows, parallel grid)
# ---------------------------------------------------------------------------
def _choose_tm(m):
    # Largest row tile that divides M (keeps edge handling trivial). At
    # TM=512 with K<=1152 the double-buffered x+out tiles are ~4 MiB in bf16,
    # well inside even v7x's 64 MiB VMEM.
    for tm in (512, 256, 128, 64, 32, 16, 8):
        if m % tm == 0:
            return tm
    return m


def _fused_conv_gemm(x, w, b):
    """leaky_relu(x @ w + b, 0.2): x (M, K), w (K, N), b (N,) -> bf16 (M, N)."""
    m, k = x.shape
    kw_, n = w.shape
    assert k == kw_
    tm = _choose_tm(m)
    grid = (m // tm,)

    x_bf = x.astype(jnp.bfloat16)
    w_bf = w.astype(jnp.bfloat16)
    b2 = b.reshape(1, n).astype(jnp.float32)

    kernel = _small_k_bias_lrelu_kernel if k <= 16 else _gemm_bias_lrelu_kernel
    cost = pl.CostEstimate(
        flops=2 * m * k * n,
        transcendentals=0,
        bytes_accessed=(m * k + k * n + m * n) * 2 + n * 4,
    )
    return pl.pallas_call(
        kernel,
        out_shape=jax.ShapeDtypeStruct((m, n), jnp.bfloat16),
        grid=grid,
        in_specs=[
            pl.BlockSpec((tm, k), lambda i: (i, 0)),      # row tile of patches
            pl.BlockSpec((k, n), lambda i: (0, 0)),       # weights resident
            pl.BlockSpec((1, n), lambda i: (0, 0)),       # bias (f32)
        ],
        out_specs=pl.BlockSpec((tm, n), lambda i: (i, 0)),
        compiler_params=pltpu.CompilerParams(
            dimension_semantics=("parallel",),
            vmem_limit_bytes=_VMEM_LIMIT_BYTES,
        ),
        cost_estimate=cost,
    )(x_bf, w_bf, b2)


def _sigmoid_head(flat, wl, bl):
    """sigmoid(flat @ wl.T + bl): flat (B, K), wl (1, K), bl (1,) -> (B, 1) f32."""
    bsz, k = flat.shape
    cost = pl.CostEstimate(
        flops=2 * bsz * k,
        transcendentals=bsz,
        bytes_accessed=(bsz * k + k) * 2 + 4 + bsz * 4,
    )
    out = pl.pallas_call(
        _head_sigmoid_kernel,
        out_shape=jax.ShapeDtypeStruct((1, bsz), jnp.float32),
        grid=(1,),
        in_specs=[
            pl.BlockSpec((bsz, k), lambda i: (0, 0)),
            pl.BlockSpec((1, k), lambda i: (0, 0)),
            pl.BlockSpec((1, 1), lambda i: (0, 0)),
        ],
        out_specs=pl.BlockSpec((1, bsz), lambda i: (0, 0)),
        compiler_params=pltpu.CompilerParams(
            dimension_semantics=("arbitrary",),
            vmem_limit_bytes=_VMEM_LIMIT_BYTES,
        ),
        cost_estimate=cost,
    )(flat.astype(jnp.bfloat16), wl.astype(jnp.bfloat16),
      bl.reshape(1, 1).astype(jnp.float32))
    return out.reshape(bsz, 1)


# ---------------------------------------------------------------------------
# Conv2d(k=3, s=2, p=1) + LeakyReLU in NHWC via im2col + fused Pallas GEMM
# ---------------------------------------------------------------------------
def _im2col_nhwc(x, k=3, stride=2, pad=1):
    # x: (N, H, W, C) -> (N*OH*OW, k*k*C), patch order (kh, kw, C).
    n, h, w, c = x.shape
    xp = jnp.pad(x, ((0, 0), (pad, pad), (pad, pad), (0, 0)))
    oh = (h + 2 * pad - k) // stride + 1
    ow = (w + 2 * pad - k) // stride + 1
    cols = []
    for di in range(k):
        for dj in range(k):
            cols.append(
                xp[:, di:di + stride * oh:stride, dj:dj + stride * ow:stride, :]
            )
    patches = jnp.stack(cols, axis=3)                     # (N, OH, OW, 9, C)
    patches = patches.reshape(n * oh * ow, k * k * c)     # (M, 9*C)
    return patches, oh, ow


def _conv2d_lrelu_nhwc(x, w, b):
    """x: (N, H, W, Cin) NHWC, w: (Cout, Cin, 3, 3) (PyTorch), b: (Cout,)."""
    n = x.shape[0]
    cout = w.shape[0]
    cols, oh, ow = _im2col_nhwc(x)
    # (Cout, Cin, kh, kw) -> (kh, kw, Cin, Cout) -> (9*Cin, Cout): matches
    # the (kh, kw, C) patch ordering above.
    wmat = jnp.transpose(w, (2, 3, 1, 0)).reshape(-1, cout)
    y = _fused_conv_gemm(cols, wmat, b)                   # (N*OH*OW, Cout) bf16
    return y.reshape(n, oh, ow, cout)                     # stays NHWC


# ---------------------------------------------------------------------------
# Discriminator
# ---------------------------------------------------------------------------
def _conv_out_size(s, k=3, stride=2, pad=1):
    return (s + 2 * pad - k) // stride + 1


def init_discriminator_params(image_width, image_height, key):
    chans = [1, 32, 64, 128, 256]
    keys = jax.random.split(key, 2 * len(chans))
    convs = []
    for li in range(4):
        cin, cout = chans[li], chans[li + 1]
        w = 0.02 * jax.random.normal(keys[2 * li], (cout, cin, 3, 3), jnp.float32)
        b = 0.01 * jax.random.normal(keys[2 * li + 1], (cout,), jnp.float32)
        convs.append((w, b))
    oh, ow = image_height, image_width
    for _ in range(4):
        oh, ow = _conv_out_size(oh), _conv_out_size(ow)
    # Matches PyTorch's 256 * (image_width // 16) ** 2 for square, /16 images;
    # computed from the actual conv output so H != W does not silently break.
    lin_in = 256 * oh * ow
    wl = 0.02 * jax.random.normal(keys[8], (1, lin_in), jnp.float32)  # (out, in)
    bl = 0.01 * jax.random.normal(keys[9], (1,), jnp.float32)
    return {"convs": convs, "linear": (wl, bl)}


def discriminator_forward(params, img):
    """img: (N, 1, H, W) NCHW float32 -> (N, 1) sigmoid validity (float32)."""
    # Single layout change at the model boundary; everything inside is NHWC.
    x = jnp.transpose(img, (0, 2, 3, 1))
    for (w, b) in params["convs"]:
        x = _conv2d_lrelu_nhwc(x, w, b)
        # TODO(synk): nn.Dropout2d(0.25) is a training-time stochastic op;
        # identity here (inference / eval semantics).
    n, oh, ow, c = x.shape
    flat = x.reshape(n, oh * ow * c)                      # NHWC flatten
    wl, bl = params["linear"]
    # Reorder the PyTorch (out, C*H*W) weight to NHWC flatten order so the
    # math is identical to `out.view(N, -1)` on an NCHW tensor.
    wl_nhwc = jnp.transpose(wl.reshape(1, c, oh, ow), (0, 2, 3, 1)).reshape(1, -1)
    return _sigmoid_head(flat, wl_nhwc, bl)


if __name__ == "__main__":
    image_width = image_height = 16
    batch = 2

    key = jax.random.PRNGKey(0)
    pkey, xkey = jax.random.split(key)
    params = init_discriminator_params(image_width, image_height, pkey)
    img = jax.random.normal(xkey, (batch, 1, image_height, image_width), jnp.float32)

    fwd = jax.jit(discriminator_forward)
    validity = fwd(params, img)
    validity = jax.block_until_ready(validity)

    assert validity.shape == (batch, 1)
    assert validity.dtype == jnp.float32
    assert bool(jnp.all((validity >= 0.0) & (validity <= 1.0)))
    print("KERNEL_OK")
</pallas_src>

<mosaic_0001>
module attributes {stable_mosaic.version = 11 : i64} {
  func.func @_small_k_bias_lrelu_kernel(%arg0: i32, %arg1: memref<128x9xbf16, #tpu.memory_space<vmem>>, %arg2: memref<9x32xbf16, #tpu.memory_space<vmem>>, %arg3: memref<1x32xf32, #tpu.memory_space<vmem>>, %arg4: memref<128x32xbf16, #tpu.memory_space<vmem>>) attributes {dimension_semantics = [#tpu.dimension_semantics<parallel>], iteration_bounds = array<i64: 1>, scalar_prefetch = 0 : i64, scratch_operands = 0 : i64, tpu.core_type = #tpu.core_type<tc>, window_params = [{transform_indices = @transform_0, window_bounds = array<i64: 128, 9>}, {pipeline_mode = #tpu.pipeline_mode<synchronous>, transform_indices = @transform_1, window_bounds = array<i64: 9, 32>}, {pipeline_mode = #tpu.pipeline_mode<synchronous>, transform_indices = @transform_2, window_bounds = array<i64: 1, 32>}, {transform_indices = @transform_3, window_bounds = array<i64: 128, 32>}]} {
    %c0 = arith.constant 0 : index
    %c0_0 = arith.constant 0 : index
    %0 = vector.load %arg1[%c0, %c0_0] : memref<128x9xbf16, #tpu.memory_space<vmem>>, vector<128x9xbf16>
    %1 = arith.extf %0 : vector<128x9xbf16> to vector<128x9xf32>
    %c0_1 = arith.constant 0 : index
    %c0_2 = arith.constant 0 : index
    %2 = vector.load %arg2[%c0_1, %c0_2] : memref<9x32xbf16, #tpu.memory_space<vmem>>, vector<9x32xbf16>
    %3 = arith.extf %2 : vector<9x32xbf16> to vector<9x32xf32>
    %c0_3 = arith.constant 0 : index
    %c0_4 = arith.constant 0 : index
    %4 = vector.load %arg3[%c0_3, %c0_4] : memref<1x32xf32, #tpu.memory_space<vmem>>, vector<1x32xf32>
    %5 = vector.shape_cast %4 : vector<1x32xf32> to vector<1x32xf32>
    %6 = vector.broadcast %5 : vector<1x32xf32> to vector<128x32xf32>
    %7 = vector.extract_strided_slice %1 {offsets = [0, 0], sizes = [128, 1], strides = [1, 1]} : vector<128x9xf32> to vector<128x1xf32>
    %8 = vector.extract_strided_slice %3 {offsets = [0, 0], sizes = [1, 32], strides = [1, 1]} : vector<9x32xf32> to vector<1x32xf32>
    %9 = vector.broadcast %7 : vector<128x1xf32> to vector<128x32xf32>
    %10 = vector.broadcast %8 : vector<1x32xf32> to vector<128x32xf32>
    %11 = arith.mulf %9, %10 : vector<128x32xf32>
    %12 = arith.addf %6, %11 : vector<128x32xf32>
    %13 = vector.extract_strided_slice %1 {offsets = [0, 1], sizes = [128, 1], strides = [1, 1]} : vector<128x9xf32> to vector<128x1xf32>
    %14 = vector.extract_strided_slice %3 {offsets = [1, 0], sizes = [1, 32], strides = [1, 1]} : vector<9x32xf32> to vector<1x32xf32>
    %15 = vector.broadcast %13 : vector<128x1xf32> to vector<128x32xf32>
    %16 = vector.broadcast %14 : vector<1x32xf32> to vector<128x32xf32>
    %17 = arith.mulf %15, %16 : vector<128x32xf32>
    %18 = arith.addf %12, %17 : vector<128x32xf32>
    %19 = vector.extract_strided_slice %1 {offsets = [0, 2], sizes = [128, 1], strides = [1, 1]} : vector<128x9xf32> to vector<128x1xf32>
    %20 = vector.extract_strided_slice %3 {offsets = [2, 0], sizes = [1, 32], strides = [1, 1]} : vector<9x32xf32> to vector<1x32xf32>
    %21 = vector.broadcast %19 : vector<128x1xf32> to vector<128x32xf32>
    %22 = vector.broadcast %20 : vector<1x32xf32> to vector<128x32xf32>
    %23 = arith.mulf %21, %22 : vector<128x32xf32>
    %24 = arith.addf %18, %23 : vector<128x32xf32>
    %25 = vector.extract_strided_slice %1 {offsets = [0, 3], sizes = [128, 1], strides = [1, 1]} : vector<128x9xf32> to vector<128x1xf32>
    %26 = vector.extract_strided_slice %3 {offsets = [3, 0], sizes = [1, 32], strides = [1, 1]} : vector<9x32xf32> to vector<1x32xf32>
    %27 = vector.broadcast %25 : vector<128x1xf32> to vector<128x32xf32>
    %28 = vector.broadcast %26 : vector<1x32xf32> to vector<128x32xf32>
    %29 = arith.mulf %27, %28 : vector<128x32xf32>
    %30 = arith.addf %24, %29 : vector<128x32xf32>
    %31 = vector.extract_strided_slice %1 {offsets = [0, 4], sizes = [128, 1], strides = [1, 1]} : vector<128x9xf32> to vector<128x1xf32>
    %32 = vector.extract_strided_slice %3 {offsets = [4, 0], sizes = [1, 32], strides = [1, 1]} : vector<9x32xf32> to vector<1x32xf32>
    %33 = vector.broadcast %31 : vector<128x1xf32> to vector<128x32xf32>
    %34 = vector.broadcast %32 : vector<1x32xf32> to vector<128x32xf32>
    %35 = arith.mulf %33, %34 : vector<128x32xf32>
    %36 = arith.addf %30, %35 : vector<128x32xf32>
    %37 = vector.extract_strided_slice %1 {offsets = [0, 5], sizes = [128, 1], strides = [1, 1]} : vector<128x9xf32> to vector<128x1xf32>
    %38 = vector.extract_strided_slice %3 {offsets = [5, 0], sizes = [1, 32], strides = [1, 1]} : vector<9x32xf32> to vector<1x32xf32>
    %39 = vector.broadcast %37 : vector<128x1xf32> to vector<128x32xf32>
    %40 = vector.broadcast %38 : vector<1x32xf32> to vector<128x32xf32>
    %41 = arith.mulf %39, %40 : vector<128x32xf32>
    %42 = arith.addf %36, %41 : vector<128x32xf32>
    %43 = vector.extract_strided_slice %1 {offsets = [0, 6], sizes = [128, 1], strides = [1, 1]} : vector<128x9xf32> to vector<128x1xf32>
    %44 = vector.extract_strided_slice %3 {offsets = [6, 0], sizes = [1, 32], strides = [1, 1]} : vector<9x32xf32> to vector<1x32xf32>
    %45 = vector.broadcast %43 : vector<128x1xf32> to vector<128x32xf32>
    %46 = vector.broadcast %44 : vector<1x32xf32> to vector<128x32xf32>
    %47 = arith.mulf %45, %46 : vector<128x32xf32>
    %48 = arith.addf %42, %47 : vector<128x32xf32>
    %49 = vector.extract_strided_slice %1 {offsets = [0, 7], sizes = [128, 1], strides = [1, 1]} : vector<128x9xf32> to vector<128x1xf32>
    %50 = vector.extract_strided_slice %3 {offsets = [7, 0], sizes = [1, 32], strides = [1, 1]} : vector<9x32xf32> to vector<1x32xf32>
    %51 = vector.broadcast %49 : vector<128x1xf32> to vector<128x32xf32>
    %52 = vector.broadcast %50 : vector<1x32xf32> to vector<128x32xf32>
    %53 = arith.mulf %51, %52 : vector<128x32xf32>
    %54 = arith.addf %48, %53 : vector<128x32xf32>
    %55 = vector.extract_strided_slice %1 {offsets = [0, 8], sizes = [128, 1], strides = [1, 1]} : vector<128x9xf32> to vector<128x1xf32>
    %56 = vector.extract_strided_slice %3 {offsets = [8, 0], sizes = [1, 32], strides = [1, 1]} : vector<9x32xf32> to vector<1x32xf32>
    %57 = vector.broadcast %55 : vector<128x1xf32> to vector<128x32xf32>
    %58 = vector.broadcast %56 : vector<1x32xf32> to vector<128x32xf32>
    %59 = arith.mulf %57, %58 : vector<128x32xf32>
    %60 = arith.addf %54, %59 : vector<128x32xf32>
    %cst = arith.constant 0.000000e+00 : f32
    %61 = vector.broadcast %cst : f32 to vector<128x32xf32>
    %62 = arith.cmpf ogt, %60, %61 : vector<128x32xf32>
    %cst_5 = arith.constant 2.000000e-01 : f32
    %63 = vector.broadcast %cst_5 : f32 to vector<128x32xf32>
    %64 = arith.mulf %63, %60 : vector<128x32xf32>
    %65 = arith.select %62, %60, %64 : vector<128x32xi1>, vector<128x32xf32>
    %66 = arith.truncf %65 : vector<128x32xf32> to vector<128x32xbf16>
    %c0_6 = arith.constant 0 : index
    %c0_7 = arith.constant 0 : index
    %67 = vector.load %arg4[%c0_6, %c0_7] : memref<128x32xbf16, #tpu.memory_space<vmem>>, vector<128x32xbf16>
    tpu.vector_store %arg4[%c0_6, %c0_7], %66 {strides = array<i32>} : memref<128x32xbf16, #tpu.memory_space<vmem>>, vector<128x32xbf16>,
    return
  }
  func.func @transform_0(%arg0: i32) -> (i32, i32) {
    %c0_i32 = arith.constant 0 : i32
    %c0_i32_0 = arith.constant 0 : i32
    return %arg0, %c0_i32 : i32, i32
  }
  func.func @transform_1(%arg0: i32) -> (i32, i32) {
    %c0_i32 = arith.constant 0 : i32
    %c0_i32_0 = arith.constant 0 : i32
    %c0_i32_1 = arith.constant 0 : i32
    return %c0_i32, %c0_i32_0 : i32, i32
  }
  func.func @transform_2(%arg0: i32) -> (i32, i32) {
    %c0_i32 = arith.constant 0 : i32
    %c0_i32_0 = arith.constant 0 : i32
    %c0_i32_1 = arith.constant 0 : i32
    return %c0_i32, %c0_i32_0 : i32, i32
  }
  func.func @transform_3(%arg0: i32) -> (i32, i32) {
    %c0_i32 = arith.constant 0 : i32
    %c0_i32_0 = arith.constant 0 : i32
    return %arg0, %c0_i32 : i32, i32
  }
}

module attributes {stable_mosaic.version = 11 : i64} {
  func.func @_gemm_bias_lrelu_kernel(%arg0: i32, %arg1: memref<32x288xbf16, #tpu.memory_space<vmem>>, %arg2: memref<288x64xbf16, #tpu.memory_space<vmem>>, %arg3: memref<1x64xf32, #tpu.memory_space<vmem>>, %arg4: memref<32x64xbf16, #tpu.memory_space<vmem>>) attributes {dimension_semantics = [#tpu.dimension_semantics<parallel>], iteration_bounds = array<i64: 1>, scalar_prefetch = 0 : i64, scratch_operands = 0 : i64, tpu.core_type = #tpu.core_type<tc>, window_params = [{transform_indices = @transform_0, window_bounds = array<i64: 32, 288>}, {pipeline_mode = #tpu.pipeline_mode<synchronous>, transform_indices = @transform_1, window_bounds = array<i64: 288, 64>}, {pipeline_mode = #tpu.pipeline_mode<synchronous>, transform_indices = @transform_2, window_bounds = array<i64: 1, 64>}, {transform_indices = @transform_3, window_bounds = array<i64: 32, 64>}]} {
    %c0 = arith.constant 0 : index
    %c0_0 = arith.constant 0 : index
    %0 = vector.load %arg1[%c0, %c0_0] : memref<32x288xbf16, #tpu.memory_space<vmem>>, vector<32x288xbf16>
    %c0_1 = arith.constant 0 : index
    %c0_2 = arith.constant 0 : index
    %1 = vector.load %arg2[%c0_1, %c0_2] : memref<288x64xbf16, #tpu.memory_space<vmem>>, vector<288x64xbf16>
    %cst = arith.constant dense<0.000000e+00> : vector<32x64xf32>
    %2 = tpu.matmul %0, %1, %cst {dimension_numbers = #tpu.dot_dimension_numbers<[1], [0], [0], [1], [0, 0, 1, 1], [], []>} : vector<32x288xbf16>, vector<288x64xbf16>, vector<32x64xf32> -> vector<32x64xf32>
    %c0_3 = arith.constant 0 : index
    %c0_4 = arith.constant 0 : index
    %3 = vector.load %arg3[%c0_3, %c0_4] : memref<1x64xf32, #tpu.memory_space<vmem>>, vector<1x64xf32>
    %4 = vector.broadcast %3 : vector<1x64xf32> to vector<32x64xf32>
    %5 = arith.addf %2, %4 : vector<32x64xf32>
    %cst_5 = arith.constant 0.000000e+00 : f32
    %6 = vector.broadcast %cst_5 : f32 to vector<32x64xf32>
    %7 = arith.cmpf ogt, %5, %6 : vector<32x64xf32>
    %cst_6 = arith.constant 2.000000e-01 : f32
    %8 = vector.broadcast %cst_6 : f32 to vector<32x64xf32>
    %9 = arith.mulf %8, %5 : vector<32x64xf32>
    %10 = arith.select %7, %5, %9 : vector<32x64xi1>, vector<32x64xf32>
    %11 = arith.truncf %10 : vector<32x64xf32> to vector<32x64xbf16>
    %c0_7 = arith.constant 0 : index
    %c0_8 = arith.constant 0 : index
    %12 = vector.load %arg4[%c0_7, %c0_8] : memref<32x64xbf16, #tpu.memory_space<vmem>>, vector<32x64xbf16>
    tpu.vector_store %arg4[%c0_7, %c0_8], %11 {strides = array<i32>} : memref<32x64xbf16, #tpu.memory_space<vmem>>, vector<32x64xbf16>,
    return
  }
  func.func @transform_0(%arg0: i32) -> (i32, i32) {
    %c0_i32 = arith.constant 0 : i32
    %c0_i32_0 = arith.constant 0 : i32
    return %arg0, %c0_i32 : i32, i32
  }
  func.func @transform_1(%arg0: i32) -> (i32, i32) {
    %c0_i32 = arith.constant 0 : i32
    %c0_i32_0 = arith.constant 0 : i32
    %c0_i32_1 = arith.constant 0 : i32
    return %c0_i32, %c0_i32_0 : i32, i32
  }
  func.func @transform_2(%arg0: i32) -> (i32, i32) {
    %c0_i32 = arith.constant 0 : i32
    %c0_i32_0 = arith.constant 0 : i32
    %c0_i32_1 = arith.constant 0 : i32
    return %c0_i32, %c0_i32_0 : i32, i32
  }
  func.func @transform_3(%arg0: i32) -> (i32, i32) {
    %c0_i32 = arith.constant 0 : i32
    %c0_i32_0 = arith.constant 0 : i32
    return %arg0, %c0_i32 : i32, i32
  }
}

module attributes {stable_mosaic.version = 11 : i64} {
  func.func @_gemm_bias_lrelu_kernel(%arg0: i32, %arg1: memref<2x1152xbf16, #tpu.memory_space<vmem>>, %arg2: memref<1152x256xbf16, #tpu.memory_space<vmem>>, %arg3: memref<1x256xf32, #tpu.memory_space<vmem>>, %arg4: memref<2x256xbf16, #tpu.memory_space<vmem>>) attributes {dimension_semantics = [#tpu.dimension_semantics<parallel>], iteration_bounds = array<i64: 1>, scalar_prefetch = 0 : i64, scratch_operands = 0 : i64, tpu.core_type = #tpu.core_type<tc>, window_params = [{transform_indices = @transform_0, window_bounds = array<i64: 2, 1152>}, {pipeline_mode = #tpu.pipeline_mode<synchronous>, transform_indices = @transform_1, window_bounds = array<i64: 1152, 256>}, {pipeline_mode = #tpu.pipeline_mode<synchronous>, transform_indices = @transform_2, window_bounds = array<i64: 1, 256>}, {transform_indices = @transform_3, window_bounds = array<i64: 2, 256>}]} {
    %c0 = arith.constant 0 : index
    %c0_0 = arith.constant 0 : index
    %0 = vector.load %arg1[%c0, %c0_0] : memref<2x1152xbf16, #tpu.memory_space<vmem>>, vector<2x1152xbf16>
    %c0_1 = arith.constant 0 : index
    %c0_2 = arith.constant 0 : index
    %1 = vector.load %arg2[%c0_1, %c0_2] : memref<1152x256xbf16, #tpu.memory_space<vmem>>, vector<1152x256xbf16>
    %cst = arith.constant dense<0.000000e+00> : vector<2x256xf32>
    %2 = tpu.matmul %0, %1, %cst {dimension_numbers = #tpu.dot_dimension_numbers<[1], [0], [0], [1], [0, 0, 1, 1], [], []>} : vector<2x1152xbf16>, vector<1152x256xbf16>, vector<2x256xf32> -> vector<2x256xf32>
    %c0_3 = arith.constant 0 : index
    %c0_4 = arith.constant 0 : index
    %3 = vector.load %arg3[%c0_3, %c0_4] : memref<1x256xf32, #tpu.memory_space<vmem>>, vector<1x256xf32>
    %4 = vector.broadcast %3 : vector<1x256xf32> to vector<2x256xf32>
    %5 = arith.addf %2, %4 : vector<2x256xf32>
    %cst_5 = arith.constant 0.000000e+00 : f32
    %6 = vector.broadcast %cst_5 : f32 to vector<2x256xf32>
    %7 = arith.cmpf ogt, %5, %6 : vector<2x256xf32>
    %cst_6 = arith.constant 2.000000e-01 : f32
    %8 = vector.broadcast %cst_6 : f32 to vector<2x256xf32>
    %9 = arith.mulf %8, %5 : vector<2x256xf32>
    %10 = arith.select %7, %5, %9 : vector<2x256xi1>, vector<2x256xf32>
    %11 = arith.truncf %10 : vector<2x256xf32> to vector<2x256xbf16>
    %c0_7 = arith.constant 0 : index
    %c0_8 = arith.constant 0 : index
    %12 = vector.load %arg4[%c0_7, %c0_8] : memref<2x256xbf16, #tpu.memory_space<vmem>>, vector<2x256xbf16>
    tpu.vector_store %arg4[%c0_7, %c0_8], %11 {strides = array<i32>} : memref<2x256xbf16, #tpu.memory_space<vmem>>, vector<2x256xbf16>,
    return
  }
  func.func @transform_0(%arg0: i32) -> (i32, i32) {
    %c0_i32 = arith.constant 0 : i32
    %c0_i32_0 = arith.constant 0 : i32
    return %arg0, %c0_i32 : i32, i32
  }
  func.func @transform_1(%arg0: i32) -> (i32, i32) {
    %c0_i32 = arith.constant 0 : i32
    %c0_i32_0 = arith.constant 0 : i32
    %c0_i32_1 = arith.constant 0 : i32
    return %c0_i32, %c0_i32_0 : i32, i32
  }
  func.func @transform_2(%arg0: i32) -> (i32, i32) {
    %c0_i32 = arith.constant 0 : i32
    %c0_i32_0 = arith.constant 0 : i32
    %c0_i32_1 = arith.constant 0 : i32
    return %c0_i32, %c0_i32_0 : i32, i32
  }
  func.func @transform_3(%arg0: i32) -> (i32, i32) {
    %c0_i32 = arith.constant 0 : i32
    %c0_i32_0 = arith.constant 0 : i32
    return %arg0, %c0_i32 : i32, i32
  }
}

module attributes {stable_mosaic.version = 11 : i64} {
  func.func @_gemm_bias_lrelu_kernel(%arg0: i32, %arg1: memref<8x576xbf16, #tpu.memory_space<vmem>>, %arg2: memref<576x128xbf16, #tpu.memory_space<vmem>>, %arg3: memref<1x128xf32, #tpu.memory_space<vmem>>, %arg4: memref<8x128xbf16, #tpu.memory_space<vmem>>) attributes {dimension_semantics = [#tpu.dimension_semantics<parallel>], iteration_bounds = array<i64: 1>, scalar_prefetch = 0 : i64, scratch_operands = 0 : i64, tpu.core_type = #tpu.core_type<tc>, window_params = [{transform_indices = @transform_0, window_bounds = array<i64: 8, 576>}, {pipeline_mode = #tpu.pipeline_mode<synchronous>, transform_indices = @transform_1, window_bounds = array<i64: 576, 128>}, {pipeline_mode = #tpu.pipeline_mode<synchronous>, transform_indices = @transform_2, window_bounds = array<i64: 1, 128>}, {transform_indices = @transform_3, window_bounds = array<i64: 8, 128>}]} {
    %c0 = arith.constant 0 : index
    %c0_0 = arith.constant 0 : index
    %0 = vector.load %arg1[%c0, %c0_0] : memref<8x576xbf16, #tpu.memory_space<vmem>>, vector<8x576xbf16>
    %c0_1 = arith.constant 0 : index
    %c0_2 = arith.constant 0 : index
    %1 = vector.load %arg2[%c0_1, %c0_2] : memref<576x128xbf16, #tpu.memory_space<vmem>>, vector<576x128xbf16>
    %cst = arith.constant dense<0.000000e+00> : vector<8x128xf32>
    %2 = tpu.matmul %0, %1, %cst {dimension_numbers = #tpu.dot_dimension_numbers<[1], [0], [0], [1], [0, 0, 1, 1], [], []>} : vector<8x576xbf16>, vector<576x128xbf16>, vector<8x128xf32> -> vector<8x128xf32>
    %c0_3 = arith.constant 0 : index
    %c0_4 = arith.constant 0 : index
    %3 = vector.load %arg3[%c0_3, %c0_4] : memref<1x128xf32, #tpu.memory_space<vmem>>, vector<1x128xf32>
    %4 = vector.broadcast %3 : vector<1x128xf32> to vector<8x128xf32>
    %5 = arith.addf %2, %4 : vector<8x128xf32>
    %cst_5 = arith.constant 0.000000e+00 : f32
    %6 = vector.broadcast %cst_5 : f32 to vector<8x128xf32>
    %7 = arith.cmpf ogt, %5, %6 : vector<8x128xf32>
    %cst_6 = arith.constant 2.000000e-01 : f32
    %8 = vector.broadcast %cst_6 : f32 to vector<8x128xf32>
    %9 = arith.mulf %8, %5 : vector<8x128xf32>
    %10 = arith.select %7, %5, %9 : vector<8x128xi1>, vector<8x128xf32>
    %11 = arith.truncf %10 : vector<8x128xf32> to vector<8x128xbf16>
    %c0_7 = arith.constant 0 : index
    %c0_8 = arith.constant 0 : index
    %12 = vector.load %arg4[%c0_7, %c0_8] : memref<8x128xbf16, #tpu.memory_space<vmem>>, vector<8x128xbf16>
    tpu.vector_store %arg4[%c0_7, %c0_8], %11 {strides = array<i32>} : memref<8x128xbf16, #tpu.memory_space<vmem>>, vector<8x128xbf16>,
    return
  }
  func.func @transform_0(%arg0: i32) -> (i32, i32) {
    %c0_i32 = arith.constant 0 : i32
    %c0_i32_0 = arith.constant 0 : i32
    return %arg0, %c0_i32 : i32, i32
  }
  func.func @transform_1(%arg0: i32) -> (i32, i32) {
    %c0_i32 = arith.constant 0 : i32
    %c0_i32_0 = arith.constant 0 : i32
    %c0_i32_1 = arith.constant 0 : i32
    return %c0_i32, %c0_i32_0 : i32, i32
  }
  func.func @transform_2(%arg0: i32) -> (i32, i32) {
    %c0_i32 = arith.constant 0 : i32
    %c0_i32_0 = arith.constant 0 : i32
    %c0_i32_1 = arith.constant 0 : i32
    return %c0_i32, %c0_i32_0 : i32, i32
  }
  func.func @transform_3(%arg0: i32) -> (i32, i32) {
    %c0_i32 = arith.constant 0 : i32
    %c0_i32_0 = arith.constant 0 : i32
    return %arg0, %c0_i32 : i32, i32
  }
}

module attributes {stable_mosaic.version = 11 : i64} {
  func.func @_head_sigmoid_kernel(%arg0: i32, %arg1: memref<2x256xbf16, #tpu.memory_space<vmem>>, %arg2: memref<1x256xbf16, #tpu.memory_space<vmem>>, %arg3: memref<1x1xf32, #tpu.memory_space<vmem>>, %arg4: memref<1x2xf32, #tpu.memory_space<vmem>>) attributes {dimension_semantics = [#tpu.dimension_semantics<arbitrary>], iteration_bounds = array<i64: 1>, scalar_prefetch = 0 : i64, scratch_operands = 0 : i64, tpu.core_type = #tpu.core_type<tc>, window_params = [{pipeline_mode = #tpu.pipeline_mode<synchronous>, transform_indices = @transform_0, window_bounds = array<i64: 2, 256>}, {pipeline_mode = #tpu.pipeline_mode<synchronous>, transform_indices = @transform_1, window_bounds = array<i64: 1, 256>}, {pipeline_mode = #tpu.pipeline_mode<synchronous>, transform_indices = @transform_2, window_bounds = array<i64: 1, 1>}, {pipeline_mode = #tpu.pipeline_mode<synchronous>, transform_indices = @transform_3, window_bounds = array<i64: 1, 2>}]} {
    %c0 = arith.constant 0 : index
    %c0_0 = arith.constant 0 : index
    %0 = vector.load %arg2[%c0, %c0_0] : memref<1x256xbf16, #tpu.memory_space<vmem>>, vector<1x256xbf16>
    %c0_1 = arith.constant 0 : index
    %c0_2 = arith.constant 0 : index
    %1 = vector.load %arg1[%c0_1, %c0_2] : memref<2x256xbf16, #tpu.memory_space<vmem>>, vector<2x256xbf16>
    %cst = arith.constant dense<0.000000e+00> : vector<1x2xf32>
    %2 = tpu.matmul %0, %1, %cst {dimension_numbers = #tpu.dot_dimension_numbers<[1], [1], [0], [0], [0, 0, 1, 0], [], []>} : vector<1x256xbf16>, vector<2x256xbf16>, vector<1x2xf32> -> vector<1x2xf32>
    %c0_3 = arith.constant 0 : index
    %c0_4 = arith.constant 0 : index
    %3 = vector.load %arg3[%c0_3, %c0_4] : memref<1x1xf32, #tpu.memory_space<vmem>>, vector<1x1xf32>
    %4 = vector.broadcast %3 : vector<1x1xf32> to vector<1x2xf32>
    %5 = arith.addf %2, %4 : vector<1x2xf32>
    %6 = arith.negf %5 : vector<1x2xf32>
    %7 = math.exp %6 : vector<1x2xf32>
    %cst_5 = arith.constant 1.000000e+00 : f32
    %8 = vector.broadcast %cst_5 : f32 to vector<1x2xf32>
    %9 = arith.addf %8, %7 : vector<1x2xf32>
    %10 = arith.divf %8, %9 : vector<1x2xf32>
    %c0_6 = arith.constant 0 : index
    %c0_7 = arith.constant 0 : index
    %11 = vector.load %arg4[%c0_6, %c0_7] : memref<1x2xf32, #tpu.memory_space<vmem>>, vector<1x2xf32>
    tpu.vector_store %arg4[%c0_6, %c0_7], %10 {strides = array<i32>} : memref<1x2xf32, #tpu.memory_space<vmem>>, vector<1x2xf32>,
    return
  }
  func.func @transform_0(%arg0: i32) -> (i32, i32) {
    %c0_i32 = arith.constant 0 : i32
    %c0_i32_0 = arith.constant 0 : i32
    %c0_i32_1 = arith.constant 0 : i32
    return %c0_i32, %c0_i32_0 : i32, i32
  }
  func.func @transform_1(%arg0: i32) -> (i32, i32) {
    %c0_i32 = arith.constant 0 : i32
    %c0_i32_0 = arith.constant 0 : i32
    %c0_i32_1 = arith.constant 0 : i32
    return %c0_i32, %c0_i32_0 : i32, i32
  }
  func.func @transform_2(%arg0: i32) -> (i32, i32) {
    %c0_i32 = arith.constant 0 : i32
    %c0_i32_0 = arith.constant 0 : i32
    %c0_i32_1 = arith.constant 0 : i32
    return %c0_i32, %c0_i32_0 : i32, i32
  }
  func.func @transform_3(%arg0: i32) -> (i32, i32) {
    %c0_i32 = arith.constant 0 : i32
    %c0_i32_0 = arith.constant 0 : i32
    %c0_i32_1 = arith.constant 0 : i32
    return %c0_i32, %c0_i32_0 : i32, i32
  }
}

</mosaic_0001>

<llo_original>
// kernel: discriminator_forward.5
$region0: #{discriminator_forward.5}
  #allocation0 [shape = 'u32[]', space=smem, size = 0x4, offset = 0x4, fixed_abs, tag = 'smem constant byte address 0x4 - core index']
  #allocation1 [shape = 'u32[144,128]{1,0:T(1,128)}', space=vmem, size = 0x12000, scoped, tag = 'internal scratch']
  %s0 = inlined_call_operand.vmem [shape: bf16[128,9], index: 0, kind: input, shape index: {}]
  %s1 = inlined_call_operand.vmem [shape: bf16[9,32], index: 1, kind: input, shape index: {}]
  %s2 = inlined_call_operand.hbm [shape: f32[1,32], index: 2, kind: input, shape index: {}]
  %s3 = inlined_call_operand.vmem [shape: bf16[128,32], index: 3, kind: output, shape index: {}]
  %s4 = sld [smem:[#allocation0]]
  $region26: #{discriminator_forward.5} parent=0
    _
  %s6 = ssub.s32 1, %s4
  %s7 = scalar_select 0, %s6, %s4
  $region1: #{discriminator_forward.5} parent=0
    #allocation2 [shape = 'u8[512]{0}', space=vmem, size = 0x400, scoped, tag = 'input window, operand 2, single buffered']
    #allocation3 [shape = 's32[1]{0}', space=sflag, size = 0x4, scoped, tag = 'scoped memory for discriminator_forward.5']
    %8 = vsyncpa [#allocation3], 0
    // Predicated region
    $region2: #{discriminator_forward.5} parent=1 // pred_check
      _
    $region3: #{discriminator_forward.5} parent=1 // pred_check_branch
      %10 = sbr.rel (0) target = $region5
    $region4: #{discriminator_forward.5} parent=1 // pred_region
      _
    $region5: #{discriminator_forward.5} parent=1 // pred_fallthru
      _
    // Predicated region
    $region6: #{discriminator_forward.5} parent=1 // pred_check
      _
    $region7: #{discriminator_forward.5} parent=1 // pred_check_branch
      %12 = sbr.rel (0) target = $region9
    $region8: #{discriminator_forward.5} parent=1 // pred_region
      _
    $region9: #{discriminator_forward.5} parent=1 // pred_fallthru
      _
    // Predicated region
    $region10: #{discriminator_forward.5} parent=1 // pred_check
      _
    $region11: #{discriminator_forward.5} parent=1 // pred_check_branch
      %14 = sbr.rel (0) target = $region13
    $region12: #{discriminator_forward.5} parent=1 // pred_region
      %s16 = ssub.s32 16, 16
      %17 = vsyncadd [#allocation3], %s16
      %s19 = sshll.u32 [#allocation2], 4
      %s20 = int_to_ptr.vmem [resolvable:$true] %s19
      %22 = dma.hbm_to_vmem [thread:$0]  %s2, 16, %s20, [#allocation3]
    $region13: #{discriminator_forward.5} parent=1 // pred_fallthru
      _
    // Predicated region
    $region14: #{discriminator_forward.5} parent=1 // pred_check
      _
    $region15: #{discriminator_forward.5} parent=1 // pred_check_branch
      %24 = sbr.rel (0) target = $region17
    $region16: #{discriminator_forward.5} parent=1 // pred_region
      %25 = dma.done [#allocation3], 16
    $region17: #{discriminator_forward.5} parent=1 // pred_fallthru
      _
    %v26 = vld [vmem:[%s0] sm:$0xf]
    %v27 = vld [vmem:[%s0 + $0x4] sm:$0xf]
    %v28 = vld [vmem:[%s0 + $0x8] sm:$0xf]
    %v29 = vld [vmem:[%s0 + $0xc] sm:$0xf]
    %v30 = vld [vmem:[%s0 + $0x10] sm:$0xf]
    %v31 = vld [vmem:[%s0 + $0x14] sm:$0xf]
    %v32 = vld [vmem:[%s0 + $0x18] sm:$0xf]
    %v33 = vld [vmem:[%s0 + $0x1c] sm:$0xf]
    %v34 = vld [vmem:[%s0 + $0x20] sm:$0xf]
    %v35 = vld [vmem:[%s0 + $0x24] sm:$0xf]
    %v36 = vld [vmem:[%s0 + $0x28] sm:$0xf]
    %v37 = vld [vmem:[%s0 + $0x2c] sm:$0xf]
    %v38 = vld [vmem:[%s0 + $0x30] sm:$0xf]
    %v39 = vld [vmem:[%s0 + $0x34] sm:$0xf]
    %v40 = vld [vmem:[%s0 + $0x38] sm:$0xf]
    %v41 = vld [vmem:[%s0 + $0x3c] sm:$0xf]
    %v42 = vunpack.c.l.bf16 %v26
    %v43 = vunpack.c.l.bf16 %v27
    %v44 = vunpack.c.l.bf16 %v28
    %v45 = vunpack.c.l.bf16 %v29
    %v46 = vunpack.c.l.bf16 %v30
    %v47 = vunpack.c.l.bf16 %v31
    %v48 = vunpack.c.l.bf16 %v32
    %v49 = vunpack.c.l.bf16 %v33
    %v50 = vunpack.c.l.bf16 %v34
    %v51 = vunpack.c.l.bf16 %v35
    %v52 = vunpack.c.l.bf16 %v36
    %v53 = vunpack.c.l.bf16 %v37
    %v54 = vunpack.c.l.bf16 %v38
    %v55 = vunpack.c.l.bf16 %v39
    %v56 = vunpack.c.l.bf16 %v40
    %v57 = vunpack.c.l.bf16 %v41
    %v58 = vld [vmem:[%s1] sm:$0xf]
    %v59 = vld [vmem:[%s1 + $0x4] sm:$0x1]
    %v60 = vunpack.c.l.bf16 %v58
    %v61 = vunpack.c.l.bf16 %v59
    %v62 = vld [vmem:[#allocation2] sm:$0x1]
    %v64 = vlaneseq
    %v65 = vshrl.u32 %v64, 7
    %v66 = vsub.s32 0, %v65
    %v67 = vrot.slane %v62, %v66
    %70 = vset.pattern.permute.xlu0 0
    %71 = vperm.xlu0 %70, %v42
    %v72 = vpop.permute.xlu0 %71
    %75 = vset.pattern.permute.xlu0 0
    %76 = vperm.xlu0 %75, %v43
    %v77 = vpop.permute.xlu0 %76
    %80 = vset.pattern.permute.xlu0 0
    %81 = vperm.xlu0 %80, %v44
    %v82 = vpop.permute.xlu0 %81
    %85 = vset.pattern.permute.xlu0 0
    %86 = vperm.xlu0 %85, %v45
    %v87 = vpop.permute.xlu0 %86
    %90 = vset.pattern.permute.xlu0 0
    %91 = vperm.xlu0 %90, %v46
    %v92 = vpop.permute.xlu0 %91
    %95 = vset.pattern.permute.xlu0 0
    %96 = vperm.xlu0 %95, %v47
    %v97 = vpop.permute.xlu0 %96
    %100 = vset.pattern.permute.xlu0 0
    %101 = vperm.xlu0 %100, %v48
    %v102 = vpop.permute.xlu0 %101
    %105 = vset.pattern.permute.xlu0 0
    %106 = vperm.xlu0 %105, %v49
    %v107 = vpop.permute.xlu0 %106
    %110 = vset.pattern.permute.xlu0 0
    %111 = vperm.xlu0 %110, %v50
    %v112 = vpop.permute.xlu0 %111
    %115 = vset.pattern.permute.xlu0 0
    %116 = vperm.xlu0 %115, %v51
    %v117 = vpop.permute.xlu0 %116
    %120 = vset.pattern.permute.xlu0 0
    %121 = vperm.xlu0 %120, %v52
    %v122 = vpop.permute.xlu0 %121
    %125 = vset.pattern.permute.xlu0 0
    %126 = vperm.xlu0 %125, %v53
    %v127 = vpop.permute.xlu0 %126
    %130 = vset.pattern.permute.xlu0 0
    %131 = vperm.xlu0 %130, %v54
    %v132 = vpop.permute.xlu0 %131
    %135 = vset.pattern.permute.xlu0 0
    %136 = vperm.xlu0 %135, %v55
    %v137 = vpop.permute.xlu0 %136
    %140 = vset.pattern.permute.xlu0 0
    %141 = vperm.xlu0 %140, %v56
    %v142 = vpop.permute.xlu0 %141
    %145 = vset.pattern.permute.xlu0 0
    %146 = vperm.xlu0 %145, %v57
    %v147 = vpop.permute.xlu0 %146
    %v149 = vlaneseq
    %v150 = vshrl.u32 %v149, 7
    %v151 = vsub.s32 0, %v150
    %v152 = vrot.slane %v60, %v151
    %v153 = vmul.f32 %v72, %v152
    %v154 = vmul.f32 %v77, %v152
    %v155 = vmul.f32 %v82, %v152
    %v156 = vmul.f32 %v87, %v152
    %v157 = vmul.f32 %v92, %v152
    %v158 = vmul.f32 %v97, %v152
    %v159 = vmul.f32 %v102, %v152
    %v160 = vmul.f32 %v107, %v152
    %v161 = vmul.f32 %v112, %v152
    %v162 = vmul.f32 %v117, %v152
    %v163 = vmul.f32 %v122, %v152
    %v164 = vmul.f32 %v127, %v152
    %v165 = vmul.f32 %v132, %v152
    %v166 = vmul.f32 %v137, %v152
    %v167 = vmul.f32 %v142, %v152
    %v168 = vmul.f32 %v147, %v152
    %v169 = vadd.f32 %v67, %v153
    %v170 = vadd.f32 %v67, %v154
    %v171 = vadd.f32 %v67, %v155
    %v172 = vadd.f32 %v67, %v156
    %v173 = vadd.f32 %v67, %v157
    %v174 = vadd.f32 %v67, %v158
    %v175 = vadd.f32 %v67, %v159
    %v176 = vadd.f32 %v67, %v160
    %v177 = vadd.f32 %v67, %v161
    %v178 = vadd.f32 %v67, %v162
    %v179 = vadd.f32 %v67, %v163
    %v180 = vadd.f32 %v67, %v164
    %v181 = vadd.f32 %v67, %v165
    %v182 = vadd.f32 %v67, %v166
    %v183 = vadd.f32 %v67, %v167
    %v184 = vadd.f32 %v67, %v168
    %185 = vset.pattern.permute.xlu0 1
    %186 = vperm.xlu0 %185, %v42
    %v187 = vpop.permute.xlu0 %186
    %189 = vset.pattern.permute.xlu0 1
    %190 = vperm.xlu0 %189, %v43
    %v191 = vpop.permute.xlu0 %190
    %193 = vset.pattern.permute.xlu0 1
    %194 = vperm.xlu0 %193, %v44
    %v195 = vpop.permute.xlu0 %194
    %197 = vset.pattern.permute.xlu0 1
    %198 = vperm.xlu0 %197, %v45
    %v199 = vpop.permute.xlu0 %198
    %201 = vset.pattern.permute.xlu0 1
    %202 = vperm.xlu0 %201, %v46
    %v203 = vpop.permute.xlu0 %202
    %205 = vset.pattern.permute.xlu0 1
    %206 = vperm.xlu0 %205, %v47
    %v207 = vpop.permute.xlu0 %206
    %209 = vset.pattern.permute.xlu0 1
    %210 = vperm.xlu0 %209, %v48
    %v211 = vpop.permute.xlu0 %210
    %213 = vset.pattern.permute.xlu0 1
    %214 = vperm.xlu0 %213, %v49
    %v215 = vpop.permute.xlu0 %214
    %217 = vset.pattern.permute.xlu0 1
    %218 = vperm.xlu0 %217, %v50
    %v219 = vpop.permute.xlu0 %218
    %221 = vset.pattern.permute.xlu0 1
    %222 = vperm.xlu0 %221, %v51
    %v223 = vpop.permute.xlu0 %222
    %225 = vset.pattern.permute.xlu0 1
    %226 = vperm.xlu0 %225, %v52
    %v227 = vpop.permute.xlu0 %226
    %229 = vset.pattern.permute.xlu0 1
    %230 = vperm.xlu0 %229, %v53
    %v231 = vpop.permute.xlu0 %230
    %233 = vset.pattern.permute.xlu0 1
    %234 = vperm.xlu0 %233, %v54
    %v235 = vpop.permute.xlu0 %234
    %237 = vset.pattern.permute.xlu0 1
    %238 = vperm.xlu0 %237, %v55
    %v239 = vpop.permute.xlu0 %238
    %241 = vset.pattern.permute.xlu0 1
    %242 = vperm.xlu0 %241, %v56
    %v243 = vpop.permute.xlu0 %242
    %245 = vset.pattern.permute.xlu0 1
    %246 = vperm.xlu0 %245, %v57
    %v247 = vpop.permute.xlu0 %246
    %v249 = vlaneseq
    %v250 = vshrl.u32 %v249, 7
    %v251 = vsub.s32 1, %v250
    %v252 = vrot.slane %v60, %v251
    %v253 = vmul.f32 %v187, %v252
    %v254 = vmul.f32 %v191, %v252
    %v255 = vmul.f32 %v195, %v252
    %v256 = vmul.f32 %v199, %v252
    %v257 = vmul.f32 %v203, %v252
    %v258 = vmul.f32 %v207, %v252
    %v259 = vmul.f32 %v211, %v252
    %v260 = vmul.f32 %v215, %v252
    %v261 = vmul.f32 %v219, %v252
    %v262 = vmul.f32 %v223, %v252
    %v263 = vmul.f32 %v227, %v252
    %v264 = vmul.f32 %v231, %v252
    %v265 = vmul.f32 %v235, %v252
    %v266 = vmul.f32 %v239, %v252
    %v267 = vmul.f32 %v243, %v252
    %v268 = vmul.f32 %v247, %v252
    %v269 = vadd.f32 %v169, %v253
    %v270 = vadd.f32 %v170, %v254
    %v271 = vadd.f32 %v171, %v255
    %v272 = vadd.f32 %v172, %v256
    %v273 = vadd.f32 %v173, %v257
    %v274 = vadd.f32 %v174, %v258
    %v275 = vadd.f32 %v175, %v259
    %v276 = vadd.f32 %v176, %v260
    %v277 = vadd.f32 %v177, %v261
    %v278 = vadd.f32 %v178, %v262
    %v279 = vadd.f32 %v179, %v263
    %v280 = vadd.f32 %v180, %v264
    %v281 = vadd.f32 %v181, %v265
    %v282 = vadd.f32 %v182, %v266
    %v283 = vadd.f32 %v183, %v267
    %v284 = vadd.f32 %v184, %v268
    %285 = vset.pattern.permute.xlu0 2
    %286 = vperm.xlu0 %285, %v42
    %v287 = vpop.permute.xlu0 %286
    %289 = vset.pattern.permute.xlu0 2
    %290 = vperm.xlu0 %289, %v43
    %v291 = vpop.permute.xlu0 %290
    %293 = vset.pattern.permute.xlu0 2
    %294 = vperm.xlu0 %293, %v44
    %v295 = vpop.permute.xlu0 %294
    %297 = vset.pattern.permute.xlu0 2
    %298 = vperm.xlu0 %297, %v45
    %v299 = vpop.permute.xlu0 %298
    %301 = vset.pattern.permute.xlu0 2
    %302 = vperm.xlu0 %301, %v46
    %v303 = vpop.permute.xlu0 %302
    %305 = vset.pattern.permute.xlu0 2
    %306 = vperm.xlu0 %305, %v47
    %v307 = vpop.permute.xlu0 %306
    %309 = vset.pattern.permute.xlu0 2
    %310 = vperm.xlu0 %309, %v48
    %v311 = vpop.permute.xlu0 %310
    %313 = vset.pattern.permute.xlu0 2
    %314 = vperm.xlu0 %313, %v49
    %v315 = vpop.permute.xlu0 %314
    %317 = vset.pattern.permute.xlu0 2
    %318 = vperm.xlu0 %317, %v50
    %v319 = vpop.permute.xlu0 %318
    %321 = vset.pattern.permute.xlu0 2
    %322 = vperm.xlu0 %321, %v51
    %v323 = vpop.permute.xlu0 %322
    %325 = vset.pattern.permute.xlu0 2
    %326 = vperm.xlu0 %325, %v52
    %v327 = vpop.permute.xlu0 %326
    %329 = vset.pattern.permute.xlu0 2
    %330 = vperm.xlu0 %329, %v53
    %v331 = vpop.permute.xlu0 %330
    %333 = vset.pattern.permute.xlu0 2
    %334 = vperm.xlu0 %333, %v54
    %v335 = vpop.permute.xlu0 %334
    %337 = vset.pattern.permute.xlu0 2
    %338 = vperm.xlu0 %337, %v55
    %v339 = vpop.permute.xlu0 %338
    %341 = vset.pattern.permute.xlu0 2
    %342 = vperm.xlu0 %341, %v56
    %v343 = vpop.permute.xlu0 %342
    %345 = vset.pattern.permute.xlu0 2
    %346 = vperm.xlu0 %345, %v57
    %v347 = vpop.permute.xlu0 %346
    %v349 = vlaneseq
    %v350 = vshrl.u32 %v349, 7
    %v351 = vsub.s32 2, %v350
    %v352 = vrot.slane %v60, %v351
    %v353 = vmul.f32 %v287, %v352
    %v354 = vmul.f32 %v291, %v352
    %v355 = vmul.f32 %v295, %v352
    %v356 = vmul.f32 %v299, %v352
    %v357 = vmul.f32 %v303, %v352
    %v358 = vmul.f32 %v307, %v352
    %v359 = vmul.f32 %v311, %v352
    %v360 = vmul.f32 %v315, %v352
    %v361 = vmul.f32 %v319, %v352
    %v362 = vmul.f32 %v323, %v352
    %v363 = vmul.f32 %v327, %v352
    %v364 = vmul.f32 %v331, %v352
    %v365 = vmul.f32 %v335, %v352
    %v366 = vmul.f32 %v339, %v352
    %v367 = vmul.f32 %v343, %v352
    %v368 = vmul.f32 %v347, %v352
    %v369 = vadd.f32 %v269, %v353
    %v370 = vadd.f32 %v270, %v354
    %v371 = vadd.f32 %v271, %v355
    %v372 = vadd.f32 %v272, %v356
    %v373 = vadd.f32 %v273, %v357
    %v374 = vadd.f32 %v274, %v358
    %v375 = vadd.f32 %v275, %v359
    %v376 = vadd.f32 %v276, %v360
    %v377 = vadd.f32 %v277, %v361
    %v378 = vadd.f32 %v278, %v362
    %v379 = vadd.f32 %v279, %v363
    %v380 = vadd.f32 %v280, %v364
    %v381 = vadd.f32 %v281, %v365
    %v382 = vadd.f32 %v282, %v366
    %v383 = vadd.f32 %v283, %v367
    %v384 = vadd.f32 %v284, %v368
    %385 = vset.pattern.permute.xlu0 3
    %386 = vperm.xlu0 %385, %v42
    %v387 = vpop.permute.xlu0 %386
    %389 = vset.pattern.permute.xlu0 3
    %390 = vperm.xlu0 %389, %v43
    %v391 = vpop.permute.xlu0 %390
    %393 = vset.pattern.permute.xlu0 3
    %394 = vperm.xlu0 %393, %v44
    %v395 = vpop.permute.xlu0 %394
    %397 = vset.pattern.permute.xlu0 3
    %398 = vperm.xlu0 %397, %v45
    %v399 = vpop.permute.xlu0 %398
    %401 = vset.pattern.permute.xlu0 3
    %402 = vperm.xlu0 %401, %v46
    %v403 = vpop.permute.xlu0 %402
    %405 = vset.pattern.permute.xlu0 3
    %406 = vperm.xlu0 %405, %v47
    %v407 = vpop.permute.xlu0 %406
    %409 = vset.pattern.permute.xlu0 3
    %410 = vperm.xlu0 %409, %v48
    %v411 = vpop.permute.xlu0 %410
    %413 = vset.pattern.permute.xlu0 3
    %414 = vperm.xlu0 %413, %v49
    %v415 = vpop.permute.xlu0 %414
    %417 = vset.pattern.permute.xlu0 3
    %418 = vperm.xlu0 %417, %v50
    %v419 = vpop.permute.xlu0 %418
    %421 = vset.pattern.permute.xlu0 3
    %422 = vperm.xlu0 %421, %v51
    %v423 = vpop.permute.xlu0 %422
    %425 = vset.pattern.permute.xlu0 3
    %426 = vperm.xlu0 %425, %v52
    %v427 = vpop.permute.xlu0 %426
    %429 = vset.pattern.permute.xlu0 3
    %430 = vperm.xlu0 %429, %v53
    %v431 = vpop.permute.xlu0 %430
    %433 = vset.pattern.permute.xlu0 3
    %434 = vperm.xlu0 %433, %v54
    %v435 = vpop.permute.xlu0 %434
    %437 = vset.pattern.permute.xlu0 3
    %438 = vperm.xlu0 %437, %v55
    %v439 = vpop.permute.xlu0 %438
    %441 = vset.pattern.permute.xlu0 3
    %442 = vperm.xlu0 %441, %v56
    %v443 = vpop.permute.xlu0 %442
    %445 = vset.pattern.permute.xlu0 3
    %446 = vperm.xlu0 %445, %v57
    %v447 = vpop.permute.xlu0 %446
    %v449 = vlaneseq
    %v450 = vshrl.u32 %v449, 7
    %v451 = vsub.s32 3, %v450
    %v452 = vrot.slane %v60, %v451
    %v453 = vmul.f32 %v387, %v452
    %v454 = vmul.f32 %v391, %v452
    %v455 = vmul.f32 %v395, %v452
    %v456 = vmul.f32 %v399, %v452
    %v457 = vmul.f32 %v403, %v452
    %v458 = vmul.f32 %v407, %v452
    %v459 = vmul.f32 %v411, %v452
    %v460 = vmul.f32 %v415, %v452
    %v461 = vmul.f32 %v419, %v452
    %v462 = vmul.f32 %v423, %v452
    %v463 = vmul.f32 %v427, %v452
    %v464 = vmul.f32 %v431, %v452
    %v465 = vmul.f32 %v435, %v452
    %v466 = vmul.f32 %v439, %v452
    %v467 = vmul.f32 %v443, %v452
    %v468 = vmul.f32 %v447, %v452
    %v469 = vadd.f32 %v369, %v453
    %v470 = vadd.f32 %v370, %v454
    %v471 = vadd.f32 %v371, %v455
    %v472 = vadd.f32 %v372, %v456
    %v473 = vadd.f32 %v373, %v457
    %v474 = vadd.f32 %v374, %v458
    %v475 = vadd.f32 %v375, %v459
    %v476 = vadd.f32 %v376, %v460
    %v477 = vadd.f32 %v377, %v461
    %v478 = vadd.f32 %v378, %v462
    %v479 = vadd.f32 %v379, %v463
    %v480 = vadd.f32 %v380, %v464
    %v481 = vadd.f32 %v381, %v465
    %v482 = vadd.f32 %v382, %v466
    %v483 = vadd.f32 %v383, %v467
    %v484 = vadd.f32 %v384, %v468
    %485 = vset.pattern.permute.xlu0 4
    %486 = vperm.xlu0 %485, %v42
    %v487 = vpop.permute.xlu0 %486
    %489 = vset.pattern.permute.xlu0 4
    %490 = vperm.xlu0 %489, %v43
    %v491 = vpop.permute.xlu0 %490
    %493 = vset.pattern.permute.xlu0 4
    %494 = vperm.xlu0 %493, %v44
    %v495 = vpop.permute.xlu0 %494
    %497 = vset.pattern.permute.xlu0 4
    %498 = vperm.xlu0 %497, %v45
    %v499 = vpop.permute.xlu0 %498
    %501 = vset.pattern.permute.xlu0 4
    %502 = vperm.xlu0 %501, %v46
    %v503 = vpop.permute.xlu0 %502
    %505 = vset.pattern.permute.xlu0 4
    %506 = vperm.xlu0 %505, %v47
    %v507 = vpop.permute.xlu0 %506
    %509 = vset.pattern.permute.xlu0 4
    %510 = vperm.xlu0 %509, %v48
    %v511 = vpop.permute.xlu0 %510
    %513 = vset.pattern.permute.xlu0 4
    %514 = vperm.xlu0 %513, %v49
    %v515 = vpop.permute.xlu0 %514
    %517 = vset.pattern.permute.xlu0 4
    %518 = vperm.xlu0 %517, %v50
    %v519 = vpop.permute.xlu0 %518
    %521 = vset.pattern.permute.xlu0 4
    %522 = vperm.xlu0 %521, %v51
    %v523 = vpop.permute.xlu0 %522
    %525 = vset.pattern.permute.xlu0 4
    %526 = vperm.xlu0 %525, %v52
    %v527 = vpop.permute.xlu0 %526
    %529 = vset.pattern.permute.xlu0 4
    %530 = vperm.xlu0 %529, %v53
    %v531 = vpop.permute.xlu0 %530
    %533 = vset.pattern.permute.xlu0 4
    %534 = vperm.xlu0 %533, %v54
    %v535 = vpop.permute.xlu0 %534
    %537 = vset.pattern.permute.xlu0 4
    %538 = vperm.xlu0 %537, %v55
    %v539 = vpop.permute.xlu0 %538
    %541 = vset.pattern.permute.xlu0 4
    %542 = vperm.xlu0 %541, %v56
    %v543 = vpop.permute.xlu0 %542
    %545 = vset.pattern.permute.xlu0 4
    %546 = vperm.xlu0 %545, %v57
    %v547 = vpop.permute.xlu0 %546
    %v549 = vlaneseq
    %v550 = vshrl.u32 %v549, 7
    %v551 = vsub.s32 4, %v550
    %v552 = vrot.slane %v60, %v551
    %v553 = vmul.f32 %v487, %v552
    %v554 = vmul.f32 %v491, %v552
    %v555 = vmul.f32 %v495, %v552
    %v556 = vmul.f32 %v499, %v552
    %v557 = vmul.f32 %v503, %v552
    %v558 = vmul.f32 %v507, %v552
    %v559 = vmul.f32 %v511, %v552
    %v560 = vmul.f32 %v515, %v552
    %v561 = vmul.f32 %v519, %v552
    %v562 = vmul.f32 %v523, %v552
    %v563 = vmul.f32 %v527, %v552
    %v564 = vmul.f32 %v531, %v552
    %v565 = vmul.f32 %v535, %v552
    %v566 = vmul.f32 %v539, %v552
    %v567 = vmul.f32 %v543, %v552
    %v568 = vmul.f32 %v547, %v552
    %v569 = vadd.f32 %v469, %v553
    %v570 = vadd.f32 %v470, %v554
    %v571 = vadd.f32 %v471, %v555
    %v572 = vadd.f32 %v472, %v556
    %v573 = vadd.f32 %v473, %v557
    %v574 = vadd.f32 %v474, %v558
    %v575 = vadd.f32 %v475, %v559
    %v576 = vadd.f32 %v476, %v560
    %v577 = vadd.f32 %v477, %v561
    %v578 = vadd.f32 %v478, %v562
    %v579 = vadd.f32 %v479, %v563
    %v580 = vadd.f32 %v480, %v564
    %v581 = vadd.f32 %v481, %v565
    %v582 = vadd.f32 %v482, %v566
    %v583 = vadd.f32 %v483, %v567
    %v584 = vadd.f32 %v484, %v568
    %585 = vset.pattern.permute.xlu0 5
    %586 = vperm.xlu0 %585, %v42
    %v587 = vpop.permute.xlu0 %586
    %589 = vset.pattern.permute.xlu0 5
    %590 = vperm.xlu0 %589, %v43
    %v591 = vpop.permute.xlu0 %590
    %593 = vset.pattern.permute.xlu0 5
    %594 = vperm.xlu0 %593, %v44
    %v595 = vpop.permute.xlu0 %594
    %597 = vset.pattern.permute.xlu0 5
    %598 = vperm.xlu0 %597, %v45
    %v599 = vpop.permute.xlu0 %598
    %601 = vset.pattern.permute.xlu0 5
    %602 = vperm.xlu0 %601, %v46
    %v603 = vpop.permute.xlu0 %602
    %605 = vset.pattern.permute.xlu0 5
    %606 = vperm.xlu0 %605, %v47
    %v607 = vpop.permute.xlu0 %606
    %609 = vset.pattern.permute.xlu0 5
    %610 = vperm.xlu0 %609, %v48
    %v611 = vpop.permute.xlu0 %610
    %613 = vset.pattern.permute.xlu0 5
    %614 = vperm.xlu0 %613, %v49
    %v615 = vpop.permute.xlu0 %614
    %617 = vset.pattern.permute.xlu0 5
    %618 = vperm.xlu0 %617, %v50
    %v619 = vpop.permute.xlu0 %618
    %621 = vset.pattern.permute.xlu0 5
    %622 = vperm.xlu0 %621, %v51
    %v623 = vpop.permute.xlu0 %622
    %625 = vset.pattern.permute.xlu0 5
    %626 = vperm.xlu0 %625, %v52
    %v627 = vpop.permute.xlu0 %626
    %629 = vset.pattern.permute.xlu0 5
    %630 = vperm.xlu0 %629, %v53
    %v631 = vpop.permute.xlu0 %630
    %633 = vset.pattern.permute.xlu0 5
    %634 = vperm.xlu0 %633, %v54
    %v635 = vpop.permute.xlu0 %634
    %637 = vset.pattern.permute.xlu0 5
    %638 = vperm.xlu0 %637, %v55
    %v639 = vpop.permute.xlu0 %638
    %641 = vset.pattern.permute.xlu0 5
    %642 = vperm.xlu0 %641, %v56
    %v643 = vpop.permute.xlu0 %642
    %645 = vset.pattern.permute.xlu0 5
    %646 = vperm.xlu0 %645, %v57
    %v647 = vpop.permute.xlu0 %646
    %v649 = vlaneseq
    %v650 = vshrl.u32 %v649, 7
    %v651 = vsub.s32 5, %v650
    %v652 = vrot.slane %v60, %v651
    %v653 = vmul.f32 %v587, %v652
    %v654 = vmul.f32 %v591, %v652
    %v655 = vmul.f32 %v595, %v652
    %v656 = vmul.f32 %v599, %v652
    %v657 = vmul.f32 %v603, %v652
    %v658 = vmul.f32 %v607, %v652
    %v659 = vmul.f32 %v611, %v652
    %v660 = vmul.f32 %v615, %v652
    %v661 = vmul.f32 %v619, %v652
    %v662 = vmul.f32 %v623, %v652
    %v663 = vmul.f32 %v627, %v652
    %v664 = vmul.f32 %v631, %v652
    %v665 = vmul.f32 %v635, %v652
    %v666 = vmul.f32 %v639, %v652
    %v667 = vmul.f32 %v643, %v652
    %v668 = vmul.f32 %v647, %v652
    %v669 = vadd.f32 %v569, %v653
    %v670 = vadd.f32 %v570, %v654
    %v671 = vadd.f32 %v571, %v655
    %v672 = vadd.f32 %v572, %v656
    %v673 = vadd.f32 %v573, %v657
    %v674 = vadd.f32 %v574, %v658
    %v675 = vadd.f32 %v575, %v659
    %v676 = vadd.f32 %v576, %v660
    %v677 = vadd.f32 %v577, %v661
    %v678 = vadd.f32 %v578, %v662
    %v679 = vadd.f32 %v579, %v663
    %v680 = vadd.f32 %v580, %v664
    %v681 = vadd.f32 %v581, %v665
    %v682 = vadd.f32 %v582, %v666
    %v683 = vadd.f32 %v583, %v667
    %v684 = vadd.f32 %v584, %v668
    %685 = vset.pattern.permute.xlu0 6
    %686 = vperm.xlu0 %685, %v42
    %v687 = vpop.permute.xlu0 %686
    %689 = vset.pattern.permute.xlu0 6
    %690 = vperm.xlu0 %689, %v43
    %v691 = vpop.permute.xlu0 %690
    %693 = vset.pattern.permute.xlu0 6
    %694 = vperm.xlu0 %693, %v44
    %v695 = vpop.permute.xlu0 %694
    %697 = vset.pattern.permute.xlu0 6
    %698 = vperm.xlu0 %697, %v45
    %v699 = vpop.permute.xlu0 %698
    %701 = vset.pattern.permute.xlu0 6
    %702 = vperm.xlu0 %701, %v46
    %v703 = vpop.permute.xlu0 %702
    %705 = vset.pattern.permute.xlu0 6
    %706 = vperm.xlu0 %705, %v47
    %v707 = vpop.permute.xlu0 %706
    %709 = vset.pattern.permute.xlu0 6
    %710 = vperm.xlu0 %709, %v48
    %v711 = vpop.permute.xlu0 %710
    %713 = vset.pattern.permute.xlu0 6
    %714 = vperm.xlu0 %713, %v49
    %v715 = vpop.permute.xlu0 %714
    %717 = vset.pattern.permute.xlu0 6
    %718 = vperm.xlu0 %717, %v50
    %v719 = vpop.permute.xlu0 %718
    %721 = vset.pattern.permute.xlu0 6
    %722 = vperm.xlu0 %721, %v51
    %v723 = vpop.permute.xlu0 %722
    %725 = vset.pattern.permute.xlu0 6
    %726 = vperm.xlu0 %725, %v52
    %v727 = vpop.permute.xlu0 %726
    %729 = vset.pattern.permute.xlu0 6
    %730 = vperm.xlu0 %729, %v53
    %v731 = vpop.permute.xlu0 %730
    %733 = vset.pattern.permute.xlu0 6
    %734 = vperm.xlu0 %733, %v54
    %v735 = vpop.permute.xlu0 %734
    %737 = vset.pattern.permute.xlu0 6
    %738 = vperm.xlu0 %737, %v55
    %v739 = vpop.permute.xlu0 %738
    %741 = vset.pattern.permute.xlu0 6
    %742 = vperm.xlu0 %741, %v56
    %v743 = vpop.permute.xlu0 %742
    %745 = vset.pattern.permute.xlu0 6
    %746 = vperm.xlu0 %745, %v57
    %v747 = vpop.permute.xlu0 %746
    %v749 = vlaneseq
    %v750 = vshrl.u32 %v749, 7
    %v751 = vsub.s32 6, %v750
    %v752 = vrot.slane %v60, %v751
    %v753 = vmul.f32 %v687, %v752
    %v754 = vmul.f32 %v691, %v752
    %v755 = vmul.f32 %v695, %v752
    %v756 = vmul.f32 %v699, %v752
    %v757 = vmul.f32 %v703, %v752
    %v758 = vmul.f32 %v707, %v752
    %v759 = vmul.f32 %v711, %v752
    %v760 = vmul.f32 %v715, %v752
    %v761 = vmul.f32 %v719, %v752
    %v762 = vmul.f32 %v723, %v752
    %v763 = vmul.f32 %v727, %v752
    %v764 = vmul.f32 %v731, %v752
    %v765 = vmul.f32 %v735, %v752
    %v766 = vmul.f32 %v739, %v752
    %v767 = vmul.f32 %v743, %v752
    %v768 = vmul.f32 %v747, %v752
    %v769 = vadd.f32 %v669, %v753
    %v770 = vadd.f32 %v670, %v754
    %v771 = vadd.f32 %v671, %v755
    %v772 = vadd.f32 %v672, %v756
    %v773 = vadd.f32 %v673, %v757
    %v774 = vadd.f32 %v674, %v758
    %v775 = vadd.f32 %v675, %v759
    %v776 = vadd.f32 %v676, %v760
    %v777 = vadd.f32 %v677, %v761
    %v778 = vadd.f32 %v678, %v762
    %v779 = vadd.f32 %v679, %v763
    %v780 = vadd.f32 %v680, %v764
    %v781 = vadd.f32 %v681, %v765
    %v782 = vadd.f32 %v682, %v766
    %v783 = vadd.f32 %v683, %v767
    %v784 = vadd.f32 %v684, %v768
    %785 = vset.pattern.permute.xlu0 7
    %786 = vperm.xlu0 %785, %v42
    %v787 = vpop.permute.xlu0 %786
    %789 = vset.pattern.permute.xlu0 7
    %790 = vperm.xlu0 %789, %v43
    %v791 = vpop.permute.xlu0 %790
    %793 = vset.pattern.permute.xlu0 7
    %794 = vperm.xlu0 %793, %v44
    %v795 = vpop.permute.xlu0 %794
    %797 = vset.pattern.permute.xlu0 7
    %798 = vperm.xlu0 %797, %v45
    %v799 = vpop.permute.xlu0 %798
    %801 = vset.pattern.permute.xlu0 7
    %802 = vperm.xlu0 %801, %v46
    %v803 = vpop.permute.xlu0 %802
    %805 = vset.pattern.permute.xlu0 7
    %806 = vperm.xlu0 %805, %v47
    %v807 = vpop.permute.xlu0 %806
    %809 = vset.pattern.permute.xlu0 7
    %810 = vperm.xlu0 %809, %v48
    %v811 = vpop.permute.xlu0 %810
    %813 = vset.pattern.permute.xlu0 7
    %814 = vperm.xlu0 %813, %v49
    %v815 = vpop.permute.xlu0 %814
    %817 = vset.pattern.permute.xlu0 7
    %818 = vperm.xlu0 %817, %v50
    %v819 = vpop.permute.xlu0 %818
    %821 = vset.pattern.permute.xlu0 7
    %822 = vperm.xlu0 %821, %v51
    %v823 = vpop.permute.xlu0 %822
    %825 = vset.pattern.permute.xlu0 7
    %826 = vperm.xlu0 %825, %v52
    %v827 = vpop.permute.xlu0 %826
    %829 = vset.pattern.permute.xlu0 7
    %830 = vperm.xlu0 %829, %v53
    %v831 = vpop.permute.xlu0 %830
    %833 = vset.pattern.permute.xlu0 7
    %834 = vperm.xlu0 %833, %v54
    %v835 = vpop.permute.xlu0 %834
    %837 = vset.pattern.permute.xlu0 7
    %838 = vperm.xlu0 %837, %v55
    %v839 = vpop.permute.xlu0 %838
    %841 = vset.pattern.permute.xlu0 7
    %842 = vperm.xlu0 %841, %v56
    %v843 = vpop.permute.xlu0 %842
    %845 = vset.pattern.permute.xlu0 7
    %846 = vperm.xlu0 %845, %v57
    %v847 = vpop.permute.xlu0 %846
    %v849 = vlaneseq
    %v850 = vshrl.u32 %v849, 7
    %v851 = vsub.s32 7, %v850
    %v852 = vrot.slane %v60, %v851
    %v853 = vmul.f32 %v787, %v852
    %v854 = vmul.f32 %v791, %v852
    %v855 = vmul.f32 %v795, %v852
    %v856 = vmul.f32 %v799, %v852
    %v857 = vmul.f32 %v803, %v852
    %v858 = vmul.f32 %v807, %v852
    %v859 = vmul.f32 %v811, %v852
    %v860 = vmul.f32 %v815, %v852
    %v861 = vmul.f32 %v819, %v852
    %v862 = vmul.f32 %v823, %v852
    %v863 = vmul.f32 %v827, %v852
    %v864 = vmul.f32 %v831, %v852
    %v865 = vmul.f32 %v835, %v852
    %v866 = vmul.f32 %v839, %v852
    %v867 = vmul.f32 %v843, %v852
    %v868 = vmul.f32 %v847, %v852
    %v869 = vadd.f32 %v769, %v853
    %v870 = vadd.f32 %v770, %v854
    %v871 = vadd.f32 %v771, %v855
    %v872 = vadd.f32 %v772, %v856
    %v873 = vadd.f32 %v773, %v857
    %v874 = vadd.f32 %v774, %v858
    %v875 = vadd.f32 %v775, %v859
    %v876 = vadd.f32 %v776, %v860
    %v877 = vadd.f32 %v777, %v861
    %v878 = vadd.f32 %v778, %v862
    %v879 = vadd.f32 %v779, %v863
    %v880 = vadd.f32 %v780, %v864
    %v881 = vadd.f32 %v781, %v865
    %v882 = vadd.f32 %v782, %v866
    %v883 = vadd.f32 %v783, %v867
    %v884 = vadd.f32 %v784, %v868
    %885 = vset.pattern.permute.xlu0 8
    %886 = vperm.xlu0 %885, %v42
    %v887 = vpop.permute.xlu0 %886
    %889 = vset.pattern.permute.xlu0 8
    %890 = vperm.xlu0 %889, %v43
    %v891 = vpop.permute.xlu0 %890
    %893 = vset.pattern.permute.xlu0 8
    %894 = vperm.xlu0 %893, %v44
    %v895 = vpop.permute.xlu0 %894
    %897 = vset.pattern.permute.xlu0 8
    %898 = vperm.xlu0 %897, %v45
    %v899 = vpop.permute.xlu0 %898
    %901 = vset.pattern.permute.xlu0 8
    %902 = vperm.xlu0 %901, %v46
    %v903 = vpop.permute.xlu0 %902
    %905 = vset.pattern.permute.xlu0 8
    %906 = vperm.xlu0 %905, %v47
    %v907 = vpop.permute.xlu0 %906
    %909 = vset.pattern.permute.xlu0 8
    %910 = vperm.xlu0 %909, %v48
    %v911 = vpop.permute.xlu0 %910
    %913 = vset.pattern.permute.xlu0 8
    %914 = vperm.xlu0 %913, %v49
    %v915 = vpop.permute.xlu0 %914
    %917 = vset.pattern.permute.xlu0 8
    %918 = vperm.xlu0 %917, %v50
    %v919 = vpop.permute.xlu0 %918
    %921 = vset.pattern.permute.xlu0 8
    %922 = vperm.xlu0 %921, %v51
    %v923 = vpop.permute.xlu0 %922
    %925 = vset.pattern.permute.xlu0 8
    %926 = vperm.xlu0 %925, %v52
    %v927 = vpop.permute.xlu0 %926
    %929 = vset.pattern.permute.xlu0 8
    %930 = vperm.xlu0 %929, %v53
    %v931 = vpop.permute.xlu0 %930
    %933 = vset.pattern.permute.xlu0 8
    %934 = vperm.xlu0 %933, %v54
    %v935 = vpop.permute.xlu0 %934
    %937 = vset.pattern.permute.xlu0 8
    %938 = vperm.xlu0 %937, %v55
    %v939 = vpop.permute.xlu0 %938
    %941 = vset.pattern.permute.xlu0 8
    %942 = vperm.xlu0 %941, %v56
    %v943 = vpop.permute.xlu0 %942
    %945 = vset.pattern.permute.xlu0 8
    %946 = vperm.xlu0 %945, %v57
    %v947 = vpop.permute.xlu0 %946
    %v949 = vlaneseq
    %v950 = vshrl.u32 %v949, 7
    %v951 = vsub.s32 0, %v950
    %v952 = vrot.slane %v61, %v951
    %v953 = vmul.f32 %v887, %v952
    %v954 = vmul.f32 %v891, %v952
    %v955 = vmul.f32 %v895, %v952
    %v956 = vmul.f32 %v899, %v952
    %v957 = vmul.f32 %v903, %v952
    %v958 = vmul.f32 %v907, %v952
    %v959 = vmul.f32 %v911, %v952
    %v960 = vmul.f32 %v915, %v952
    %v961 = vmul.f32 %v919, %v952
    %v962 = vmul.f32 %v923, %v952
    %v963 = vmul.f32 %v927, %v952
    %v964 = vmul.f32 %v931, %v952
    %v965 = vmul.f32 %v935, %v952
    %v966 = vmul.f32 %v939, %v952
    %v967 = vmul.f32 %v943, %v952
    %v968 = vmul.f32 %v947, %v952
    %v969 = vadd.f32 %v869, %v953
    %v970 = vadd.f32 %v870, %v954
    %v971 = vadd.f32 %v871, %v955
    %v972 = vadd.f32 %v872, %v956
    %v973 = vadd.f32 %v873, %v957
    %v974 = vadd.f32 %v874, %v958
    %v975 = vadd.f32 %v875, %v959
    %v976 = vadd.f32 %v876, %v960
    %v977 = vadd.f32 %v877, %v961
    %v978 = vadd.f32 %v878, %v962
    %v979 = vadd.f32 %v879, %v963
    %v980 = vadd.f32 %v880, %v964
    %v981 = vadd.f32 %v881, %v965
    %v982 = vadd.f32 %v882, %v966
    %v983 = vadd.f32 %v883, %v967
    %v984 = vadd.f32 %v884, %v968
    %vm985 = vcmp.gt.f32.partialorder %v969, 0.0
    %vm986 = vcmp.gt.f32.partialorder %v970, 0.0
    %vm987 = vcmp.gt.f32.partialorder %v971, 0.0
    %vm988 = vcmp.gt.f32.partialorder %v972, 0.0
    %vm989 = vcmp.gt.f32.partialorder %v973, 0.0
    %vm990 = vcmp.gt.f32.partialorder %v974, 0.0
    %vm991 = vcmp.gt.f32.partialorder %v975, 0.0
    %vm992 = vcmp.gt.f32.partialorder %v976, 0.0
    %vm993 = vcmp.gt.f32.partialorder %v977, 0.0
    %vm994 = vcmp.gt.f32.partialorder %v978, 0.0
    %vm995 = vcmp.gt.f32.partialorder %v979, 0.0
    %vm996 = vcmp.gt.f32.partialorder %v980, 0.0
    %vm997 = vcmp.gt.f32.partialorder %v981, 0.0
    %vm998 = vcmp.gt.f32.partialorder %v982, 0.0
    %vm999 = vcmp.gt.f32.partialorder %v983, 0.0
    %vm1000 = vcmp.gt.f32.partialorder %v984, 0.0
    %v1001 = vmul.f32 %v969, 0.2
    %v1002 = vmul.f32 %v970, 0.2
    %v1003 = vmul.f32 %v971, 0.2
    %v1004 = vmul.f32 %v972, 0.2
    %v1005 = vmul.f32 %v973, 0.2
    %v1006 = vmul.f32 %v974, 0.2
    %v1007 = vmul.f32 %v975, 0.2
    %v1008 = vmul.f32 %v976, 0.2
    %v1009 = vmul.f32 %v977, 0.2
    %v1010 = vmul.f32 %v978, 0.2
    %v1011 = vmul.f32 %v979, 0.2
    %v1012 = vmul.f32 %v980, 0.2
    %v1013 = vmul.f32 %v981, 0.2
    %v1014 = vmul.f32 %v982, 0.2
    %v1015 = vmul.f32 %v983, 0.2
    %v1016 = vmul.f32 %v984, 0.2
    %v1017 = vsel %vm985, %v969, %v1001
    %v1018 = vsel %vm986, %v970, %v1002
    %v1019 = vsel %vm987, %v971, %v1003
    %v1020 = vsel %vm988, %v972, %v1004
    %v1021 = vsel %vm989, %v973, %v1005
    %v1022 = vsel %vm990, %v974, %v1006
    %v1023 = vsel %vm991, %v975, %v1007
    %v1024 = vsel %vm992, %v976, %v1008
    %v1025 = vsel %vm993, %v977, %v1009
    %v1026 = vsel %vm994, %v978, %v1010
    %v1027 = vsel %vm995, %v979, %v1011
    %v1028 = vsel %vm996, %v980, %v1012
    %v1029 = vsel %vm997, %v981, %v1013
    %v1030 = vsel %vm998, %v982, %v1014
    %v1031 = vsel %vm999, %v983, %v1015
    %v1032 = vsel %vm1000, %v984, %v1016
    %v1033 = vpack.c.bf16 %v1018, %v1017
    %v1034 = vpack.c.bf16 %v1020, %v1019
    %v1035 = vpack.c.bf16 %v1022, %v1021
    %v1036 = vpack.c.bf16 %v1024, %v1023
    %v1037 = vpack.c.bf16 %v1026, %v1025
    %v1038 = vpack.c.bf16 %v1028, %v1027
    %v1039 = vpack.c.bf16 %v1030, %v1029
    %v1040 = vpack.c.bf16 %v1032, %v1031
    %v1049 = vunpack.c.l.b16 %v1033
    %v1050 = vunpack.c.h.b16 %v1033
    %v1051 = vunpack.c.l.b16 %v1034
    %v1052 = vunpack.c.h.b16 %v1034
    %v1053 = vunpack.c.l.b16 %v1035
    %v1054 = vunpack.c.h.b16 %v1035
    %v1055 = vunpack.c.l.b16 %v1036
    %v1056 = vunpack.c.h.b16 %v1036
    %v1057 = vunpack.c.l.b16 %v1037
    %v1058 = vunpack.c.h.b16 %v1037
    %v1059 = vunpack.c.l.b16 %v1038
    %v1060 = vunpack.c.h.b16 %v1038
    %v1061 = vunpack.c.l.b16 %v1039
    %v1062 = vunpack.c.h.b16 %v1039
    %v1063 = vunpack.c.l.b16 %v1040
    %v1064 = vunpack.c.h.b16 %v1040
    %v1065 = vpack.c.b16 %v1049, %v1049
    %v1066 = vpack.c.b16 %v1050, %v1050
    %v1067 = vpack.c.b16 %v1051, %v1051
    %v1068 = vpack.c.b16 %v1052, %v1052
    %v1069 = vpack.c.b16 %v1053, %v1053
    %v1070 = vpack.c.b16 %v1054, %v1054
    %v1071 = vpack.c.b16 %v1055, %v1055
    %v1072 = vpack.c.b16 %v1056, %v1056
    %v1073 = vpack.c.b16 %v1057, %v1057
    %v1074 = vpack.c.b16 %v1058, %v1058
    %v1075 = vpack.c.b16 %v1059, %v1059
    %v1076 = vpack.c.b16 %v1060, %v1060
    %v1077 = vpack.c.b16 %v1061, %v1061
    %v1078 = vpack.c.b16 %v1062, %v1062
    %v1079 = vpack.c.b16 %v1063, %v1063
    %v1080 = vpack.c.b16 %v1064, %v1064
    %vm1097 = vcmask 257024
    %1098 = vst.msk [vmem:[%s3] sm:$0xf] %vm1097, %v1065
    %1099 = vst.msk [vmem:[%s3 + $0x4] sm:$0xf] %vm1097, %v1066
    %1100 = vst.msk [vmem:[%s3 + $0x8] sm:$0xf] %vm1097, %v1067
    %1101 = vst.msk [vmem:[%s3 + $0xc] sm:$0xf] %vm1097, %v1068
    %1102 = vst.msk [vmem:[%s3 + $0x10] sm:$0xf] %vm1097, %v1069
    %1103 = vst.msk [vmem:[%s3 + $0x14] sm:$0xf] %vm1097, %v1070
    %1104 = vst.msk [vmem:[%s3 + $0x18] sm:$0xf] %vm1097, %v1071
    %1105 = vst.msk [vmem:[%s3 + $0x1c] sm:$0xf] %vm1097, %v1072
    %1106 = vst.msk [vmem:[%s3 + $0x20] sm:$0xf] %vm1097, %v1073
    %1107 = vst.msk [vmem:[%s3 + $0x24] sm:$0xf] %vm1097, %v1074
    %1108 = vst.msk [vmem:[%s3 + $0x28] sm:$0xf] %vm1097, %v1075
    %1109 = vst.msk [vmem:[%s3 + $0x2c] sm:$0xf] %vm1097, %v1076
    %1110 = vst.msk [vmem:[%s3 + $0x30] sm:$0xf] %vm1097, %v1077
    %1111 = vst.msk [vmem:[%s3 + $0x34] sm:$0xf] %vm1097, %v1078
    %1112 = vst.msk [vmem:[%s3 + $0x38] sm:$0xf] %vm1097, %v1079
    %1113 = vst.msk [vmem:[%s3 + $0x3c] sm:$0xf] %vm1097, %v1080
    // Predicated region
    $region18: #{discriminator_forward.5} parent=1 // pred_check
      _
    $region19: #{discriminator_forward.5} parent=1 // pred_check_branch
      %1115 = sbr.rel (0) target = $region21
    $region20: #{discriminator_forward.5} parent=1 // pred_region
      _
    $region21: #{discriminator_forward.5} parent=1 // pred_fallthru
      _
    // Predicated region
    $region22: #{discriminator_forward.5} parent=1 // pred_check
      _
    $region23: #{discriminator_forward.5} parent=1 // pred_check_branch
      %1117 = sbr.rel (0) target = $region25
    $region24: #{discriminator_forward.5} parent=1 // pred_region
      _
    $region25: #{discriminator_forward.5} parent=1 // pred_fallthru
      _
    %1118 = vsyncpa [#allocation3], 1

// kernel: discriminator_forward.6
$region0: #{discriminator_forward.6}
  #allocation0 [shape = 'u32[]', space=smem, size = 0x4, offset = 0x4, fixed_abs, tag = 'smem constant byte address 0x4 - core index']
  #allocation1 [shape = 'u32[144,128]{1,0:T(1,128)}', space=vmem, size = 0x12000, scoped, tag = 'internal scratch']
  %s0 = inlined_call_operand.vmem [shape: bf16[32,288], index: 0, kind: input, shape index: {}]
  %s1 = inlined_call_operand.vmem [shape: bf16[288,64], index: 1, kind: input, shape index: {}]
  %s2 = inlined_call_operand.vmem [shape: f32[1,64], index: 2, kind: input, shape index: {}]
  %s3 = inlined_call_operand.vmem [shape: bf16[32,64], index: 3, kind: output, shape index: {}]
  %s4 = sld [smem:[#allocation0]]
  $region22: #{discriminator_forward.6} parent=0
    _
  %s6 = ssub.s32 1, %s4
  %s7 = scalar_select 0, %s6, %s4
  // Predicated region
  $region2: #{discriminator_forward.6} parent=0 // pred_check
    _
  $region3: #{discriminator_forward.6} parent=0 // pred_check_branch
    %9 = sbr.rel (0) target = $region5
  $region4: #{discriminator_forward.6} parent=0 // pred_region
    _
  $region5: #{discriminator_forward.6} parent=0 // pred_fallthru
    _
  // Predicated region
  $region6: #{discriminator_forward.6} parent=0 // pred_check
    _
  $region7: #{discriminator_forward.6} parent=0 // pred_check_branch
    %11 = sbr.rel (0) target = $region9
  $region8: #{discriminator_forward.6} parent=0 // pred_region
    _
  $region9: #{discriminator_forward.6} parent=0 // pred_fallthru
    _
  // Predicated region
  $region10: #{discriminator_forward.6} parent=0 // pred_check
    _
  $region11: #{discriminator_forward.6} parent=0 // pred_check_branch
    %13 = sbr.rel (0) target = $region13
  $region12: #{discriminator_forward.6} parent=0 // pred_region
    _
  $region13: #{discriminator_forward.6} parent=0 // pred_fallthru
    _
  %v15 = vld [vmem:[%s0] sm:$0xff]
  %v16 = vld [vmem:[%s0 + $0x8] sm:$0xf]
  %v17 = vld [vmem:[%s0 + $0xc] sm:$0xff]
  %v18 = vld [vmem:[%s0 + $0x14] sm:$0xf]
  %v19 = vld [vmem:[%s0 + $0x18] sm:$0xff]
  %v20 = vld [vmem:[%s0 + $0x20] sm:$0xf]
  %v21 = vld [vmem:[%s0 + $0x24] sm:$0xff]
  %v22 = vld [vmem:[%s0 + $0x2c] sm:$0xf]
  %v23 = vld [vmem:[%s1] sm:$0xf]
  %v24 = vld [vmem:[%s1 + $0x4] sm:$0xf]
  %v25 = vld [vmem:[%s1 + $0x8] sm:$0xf]
  %v26 = vld [vmem:[%s1 + $0xc] sm:$0xf]
  %v27 = vld [vmem:[%s1 + $0x10] sm:$0xf]
  %v28 = vld [vmem:[%s1 + $0x14] sm:$0xf]
  %v29 = vld [vmem:[%s1 + $0x18] sm:$0xf]
  %v30 = vld [vmem:[%s1 + $0x1c] sm:$0xf]
  %v31 = vld [vmem:[%s1 + $0x20] sm:$0xf]
  %v32 = vld [vmem:[%s1 + $0x24] sm:$0xf]
  %v33 = vld [vmem:[%s1 + $0x28] sm:$0xf]
  %v34 = vld [vmem:[%s1 + $0x2c] sm:$0xf]
  %v35 = vld [vmem:[%s1 + $0x30] sm:$0xf]
  %v36 = vld [vmem:[%s1 + $0x34] sm:$0xf]
  %v37 = vld [vmem:[%s1 + $0x38] sm:$0xf]
  %v38 = vld [vmem:[%s1 + $0x3c] sm:$0xf]
  %v39 = vld [vmem:[%s1 + $0x40] sm:$0xf]
  %v40 = vld [vmem:[%s1 + $0x44] sm:$0xf]
  %v41 = vld [vmem:[%s1 + $0x48] sm:$0xf]
  %v42 = vld [vmem:[%s1 + $0x4c] sm:$0xf]
  %v43 = vld [vmem:[%s1 + $0x50] sm:$0xf]
  %v44 = vld [vmem:[%s1 + $0x54] sm:$0xf]
  %v45 = vld [vmem:[%s1 + $0x58] sm:$0xf]
  %v46 = vld [vmem:[%s1 + $0x5c] sm:$0xf]
  %v47 = vld [vmem:[%s1 + $0x60] sm:$0xf]
  %v48 = vld [vmem:[%s1 + $0x64] sm:$0xf]
  %v49 = vld [vmem:[%s1 + $0x68] sm:$0xf]
  %v50 = vld [vmem:[%s1 + $0x6c] sm:$0xf]
  %v51 = vld [vmem:[%s1 + $0x70] sm:$0xf]
  %v52 = vld [vmem:[%s1 + $0x74] sm:$0xf]
  %v53 = vld [vmem:[%s1 + $0x78] sm:$0xf]
  %v54 = vld [vmem:[%s1 + $0x7c] sm:$0xf]
  %v55 = vld [vmem:[%s1 + $0x80] sm:$0xf]
  %v56 = vld [vmem:[%s1 + $0x84] sm:$0xf]
  %v57 = vld [vmem:[%s1 + $0x88] sm:$0xf]
  %v58 = vld [vmem:[%s1 + $0x8c] sm:$0xf]
  %v59 = vld [vmem:[%s2] sm:$0x1]
  %v61 = vlaneseq
  %v62 = vshrl.u32 %v61, 7
  %v63 = vsub.s32 0, %v62
  %v64 = vrot.slane %v59, %v63
  %v74 = vunpack.c.l.b16 %v15
  %v75 = vunpack.c.h.b16 %v15
  %v76 = vunpack.c.l.b16 %v16
  %v77 = vunpack.c.l.b16 %v17
  %v78 = vunpack.c.h.b16 %v17
  %v79 = vunpack.c.l.b16 %v18
  %v80 = vunpack.c.l.b16 %v19
  %v81 = vunpack.c.h.b16 %v19
  %v82 = vunpack.c.l.b16 %v20
  %v83 = vunpack.c.l.b16 %v21
  %v84 = vunpack.c.h.b16 %v21
  %v85 = vunpack.c.l.b16 %v22
  %v86 = vpack.c.b16 %v77, %v74
  %v87 = vpack.c.b16 %v78, %v75
  %v88 = vpack.c.b16 %v79, %v76
  %v89 = vpack.c.b16 %v83, %v80
  %v90 = vpack.c.b16 %v84, %v81
  %v91 = vpack.c.b16 %v85, %v82
  %v132 = vunpack.c.l.b16 %v23
  %v133 = vunpack.c.l.b16 %v24
  %v134 = vunpack.c.l.b16 %v25
  %v135 = vunpack.c.l.b16 %v26
  %v136 = vunpack.c.l.b16 %v27
  %v137 = vunpack.c.l.b16 %v28
  %v138 = vunpack.c.l.b16 %v29
  %v139 = vunpack.c.l.b16 %v30
  %v140 = vunpack.c.l.b16 %v31
  %v141 = vunpack.c.l.b16 %v32
  %v142 = vunpack.c.l.b16 %v33
  %v143 = vunpack.c.l.b16 %v34
  %v144 = vunpack.c.l.b16 %v35
  %v145 = vunpack.c.l.b16 %v36
  %v146 = vunpack.c.l.b16 %v37
  %v147 = vunpack.c.l.b16 %v38
  %v148 = vunpack.c.l.b16 %v39
  %v149 = vunpack.c.l.b16 %v40
  %v150 = vunpack.c.l.b16 %v41
  %v151 = vunpack.c.l.b16 %v42
  %v152 = vunpack.c.l.b16 %v43
  %v153 = vunpack.c.l.b16 %v44
  %v154 = vunpack.c.l.b16 %v45
  %v155 = vunpack.c.l.b16 %v46
  %v156 = vunpack.c.l.b16 %v47
  %v157 = vunpack.c.l.b16 %v48
  %v158 = vunpack.c.l.b16 %v49
  %v159 = vunpack.c.l.b16 %v50
  %v160 = vunpack.c.l.b16 %v51
  %v161 = vunpack.c.l.b16 %v52
  %v162 = vunpack.c.l.b16 %v53
  %v163 = vunpack.c.l.b16 %v54
  %v164 = vunpack.c.l.b16 %v55
  %v165 = vunpack.c.l.b16 %v56
  %v166 = vunpack.c.l.b16 %v57
  %v167 = vunpack.c.l.b16 %v58
  %v168 = vpack.c.b16 %v133, %v132
  %v169 = vpack.c.b16 %v135, %v134
  %v170 = vpack.c.b16 %v137, %v136
  %v171 = vpack.c.b16 %v139, %v138
  %v172 = vpack.c.b16 %v141, %v140
  %v173 = vpack.c.b16 %v143, %v142
  %v174 = vpack.c.b16 %v145, %v144
  %v175 = vpack.c.b16 %v147, %v146
  %v176 = vpack.c.b16 %v149, %v148
  %v177 = vpack.c.b16 %v151, %v150
  %v178 = vpack.c.b16 %v153, %v152
  %v179 = vpack.c.b16 %v155, %v154
  %v180 = vpack.c.b16 %v157, %v156
  %v181 = vpack.c.b16 %v159, %v158
  %v182 = vpack.c.b16 %v161, %v160
  %v183 = vpack.c.b16 %v163, %v162
  %v184 = vpack.c.b16 %v165, %v164
  %v185 = vpack.c.b16 %v167, %v166
  %vm204 = vcmask 261120
  %v206 = vsel %vm204, %v88, 0
  %v209 = vsel %vm204, %v91, 0
  %211 = vmatprep.subr.bf16.mxu0 0
  %212 = vmatpush1.bf16.msra.mxu0 %v175
  %213 = vmatprep.subr.bf16.mxu0 0
  %214 = vmatpush1.bf16.msra.mxu0 %v174
  %215 = vmatprep.subr.bf16.mxu0 0
  %216 = vmatpush1.bf16.msra.mxu0 %v173
  %217 = vmatprep.subr.bf16.mxu0 0
  %218 = vmatpush1.bf16.msra.mxu0 %v172
  %219 = vmatprep.subr.bf16.mxu0 0
  %220 = vmatpush1.bf16.msra.mxu0 %v171
  %221 = vmatprep.subr.bf16.mxu0 0
  %222 = vmatpush1.bf16.msra.mxu0 %v170
  %223 = vmatprep.subr.bf16.mxu0 0
  %224 = vmatpush1.bf16.msra.mxu0 %v169
  %225 = vmatprep.subr.bf16.mxu0 0
  %226 = vmatpush1.bf16.msra.mxu0 %v168
  %227 = vmatprep.subr.bf16.mxu0 0
  %228 = vmatpush2.bf16.msra.mxu0 %v183
  %229 = vmatprep.subr.bf16.mxu0 0
  %230 = vmatpush2.bf16.msra.mxu0 %v182
  %231 = vmatprep.subr.bf16.mxu0 0
  %232 = vmatpush2.bf16.msra.mxu0 %v181
  %233 = vmatprep.subr.bf16.mxu0 0
  %234 = vmatpush2.bf16.msra.mxu0 %v180
  %235 = vmatprep.subr.bf16.mxu0 0
  %236 = vmatpush2.bf16.msra.mxu0 %v179
  %237 = vmatprep.subr.bf16.mxu0 0
  %238 = vmatpush2.bf16.msra.mxu0 %v178
  %239 = vmatprep.subr.bf16.mxu0 0
  %240 = vmatpush2.bf16.msra.mxu0 %v177
  %241 = vmatprep.subr.bf16.mxu0 0
  %242 = vmatpush2.bf16.msra.mxu0 %v176
  %243 = vmatprep.mubr.bf16.mxu0 %v87
  %244 = vmatmul.mubr.bf16.gmra.mxu0 %v86
  %v245 = vpop.f32.mrf.mxu0
  %v246 = vadd.f32 %v64, %v245
  %v247 = vpop.f32.mrf.mxu0
  %v248 = vpop.f32.mrf.mxu0
  %v249 = vadd.f32 %v64, %v248
  %v250 = vpop.f32.mrf.mxu0
  %251 = vmatprep.mubr.bf16.mxu0 %v90
  %252 = vmatmul.mubr.bf16.gmra.mxu0 %v89
  %v253 = vpop.f32.mrf.mxu0
  %v254 = vadd.f32 %v64, %v253
  %v255 = vpop.f32.mrf.mxu0
  %v256 = vpop.f32.mrf.mxu0
  %v257 = vadd.f32 %v64, %v256
  %v258 = vpop.f32.mrf.mxu0
  %259 = vdwg.mxu0
  %260 = vmatprep.subr.bf16.mxu0 0
  %261 = vmatpush1.bf16.msra.mxu0 0
  %262 = vmatprep.subr.bf16.mxu0 0
  %263 = vmatpush1.bf16.msra.mxu0 0
  %264 = vmatprep.subr.bf16.mxu0 0
  %265 = vmatpush1.bf16.msra.mxu0 0
  %266 = vmatprep.subr.bf16.mxu0 0
  %267 = vmatpush1.bf16.msra.mxu0 0
  %268 = vmatprep.subr.bf16.mxu0 0
  %269 = vmatpush1.bf16.msra.mxu0 0
  %270 = vmatprep.subr.bf16.mxu0 0
  %271 = vmatpush1.bf16.msra.mxu0 0
  %272 = vmatprep.subr.bf16.mxu0 0
  %273 = vmatpush1.bf16.msra.mxu0 %v185
  %274 = vmatprep.subr.bf16.mxu0 0
  %275 = vmatpush1.bf16.msra.mxu0 %v184
  %276 = vmatprep.subr.bf16.mxu0 0
  %277 = vmatpush2.bf16.msra.mxu0 0
  %278 = vmatprep.subr.bf16.mxu0 0
  %279 = vmatpush2.bf16.msra.mxu0 0
  %280 = vmatprep.subr.bf16.mxu0 0
  %281 = vmatpush2.bf16.msra.mxu0 0
  %282 = vmatprep.subr.bf16.mxu0 0
  %283 = vmatpush2.bf16.msra.mxu0 0
  %284 = vmatprep.subr.bf16.mxu0 0
  %285 = vmatpush2.bf16.msra.mxu0 0
  %286 = vmatprep.subr.bf16.mxu0 0
  %287 = vmatpush2.bf16.msra.mxu0 0
  %288 = vmatprep.subr.bf16.mxu0 0
  %289 = vmatpush2.bf16.msra.mxu0 0
  %290 = vmatprep.subr.bf16.mxu0 0
  %291 = vmatpush2.bf16.msra.mxu0 0
  %292 = vmatprep.mubr.bf16.mxu0 0
  %293 = vmatmul.mubr.bf16.gmra.mxu0 %v206
  %v294 = vpop.f32.mrf.mxu0
  %v295 = vadd.f32 %v246, %v294
  %v296 = vpop.f32.mrf.mxu0
  %v297 = vpop.f32.mrf.mxu0
  %v298 = vadd.f32 %v249, %v297
  %v299 = vpop.f32.mrf.mxu0
  %300 = vmatprep.mubr.bf16.mxu0 0
  %301 = vmatmul.mubr.bf16.gmra.mxu0 %v209
  %v302 = vpop.f32.mrf.mxu0
  %v303 = vadd.f32 %v254, %v302
  %v304 = vpop.f32.mrf.mxu0
  %v305 = vpop.f32.mrf.mxu0
  %v306 = vadd.f32 %v257, %v305
  %v307 = vpop.f32.mrf.mxu0
  %308 = vdwg.mxu0
  %vm309 = vcmp.gt.f32.partialorder %v295, 0.0
  %vm310 = vcmp.gt.f32.partialorder %v298, 0.0
  %vm311 = vcmp.gt.f32.partialorder %v303, 0.0
  %vm312 = vcmp.gt.f32.partialorder %v306, 0.0
  %v313 = vmul.f32 %v295, 0.2
  %v314 = vmul.f32 %v298, 0.2
  %v315 = vmul.f32 %v303, 0.2
  %v316 = vmul.f32 %v306, 0.2
  %v317 = vsel %vm309, %v295, %v313
  %v318 = vsel %vm310, %v298, %v314
  %v319 = vsel %vm311, %v303, %v315
  %v320 = vsel %vm312, %v306, %v316
  %v321 = vpack.c.bf16 %v318, %v317
  %v322 = vpack.c.bf16 %v320, %v319
  %v325 = vunpack.c.l.b16 %v321
  %v326 = vunpack.c.h.b16 %v321
  %v327 = vunpack.c.l.b16 %v322
  %v328 = vunpack.c.h.b16 %v322
  %v329 = vpack.c.b16 %v325, %v325
  %v330 = vpack.c.b16 %v326, %v326
  %v331 = vpack.c.b16 %v327, %v327
  %v332 = vpack.c.b16 %v328, %v328
  %vm337 = vcmask 519168
  %338 = vst.msk [vmem:[%s3] sm:$0xf] %vm337, %v329
  %339 = vst.msk [vmem:[%s3 + $0x4] sm:$0xf] %vm337, %v330
  %340 = vst.msk [vmem:[%s3 + $0x8] sm:$0xf] %vm337, %v331
  %341 = vst.msk [vmem:[%s3 + $0xc] sm:$0xf] %vm337, %v332
  // Predicated region
  $region14: #{discriminator_forward.6} parent=0 // pred_check
    _
  $region15: #{discriminator_forward.6} parent=0 // pred_check_branch
    %343 = sbr.rel (0) target = $region17
  $region16: #{discriminator_forward.6} parent=0 // pred_region
    _
  $region17: #{discriminator_forward.6} parent=0 // pred_fallthru
    _
  // Predicated region
  $region18: #{discriminator_forward.6} parent=0 // pred_check
    _
  $region19: #{discriminator_forward.6} parent=0 // pred_check_branch
    %345 = sbr.rel (0) target = $region21
  $region20: #{discriminator_forward.6} parent=0 // pred_region
    _
  $region21: #{discriminator_forward.6} parent=0 // pred_fallthru
    _

// kernel: discriminator_forward.7
$region0: #{discriminator_forward.7}
  #allocation0 [shape = 'u32[]', space=smem, size = 0x4, offset = 0x4, fixed_abs, tag = 'smem constant byte address 0x4 - core index']
  #allocation1 [shape = 'u32[144,128]{1,0:T(1,128)}', space=vmem, size = 0x12000, scoped, tag = 'internal scratch']
  %s0 = inlined_call_operand.vmem [shape: bf16[8,576], index: 0, kind: input, shape index: {}]
  %s1 = inlined_call_operand.vmem [shape: bf16[576,128], index: 1, kind: input, shape index: {}]
  %s2 = inlined_call_operand.vmem [shape: f32[1,128], index: 2, kind: input, shape index: {}]
  %s3 = inlined_call_operand.vmem [shape: bf16[8,128], index: 3, kind: output, shape index: {}]
  %s4 = sld [smem:[#allocation0]]
  $region22: #{discriminator_forward.7} parent=0
    _
  %s6 = ssub.s32 1, %s4
  %s7 = scalar_select 0, %s6, %s4
  // Predicated region
  $region2: #{discriminator_forward.7} parent=0 // pred_check
    _
  $region3: #{discriminator_forward.7} parent=0 // pred_check_branch
    %9 = sbr.rel (0) target = $region5
  $region4: #{discriminator_forward.7} parent=0 // pred_region
    _
  $region5: #{discriminator_forward.7} parent=0 // pred_fallthru
    _
  // Predicated region
  $region6: #{discriminator_forward.7} parent=0 // pred_check
    _
  $region7: #{discriminator_forward.7} parent=0 // pred_check_branch
    %11 = sbr.rel (0) target = $region9
  $region8: #{discriminator_forward.7} parent=0 // pred_region
    _
  $region9: #{discriminator_forward.7} parent=0 // pred_fallthru
    _
  // Predicated region
  $region10: #{discriminator_forward.7} parent=0 // pred_check
    _
  $region11: #{discriminator_forward.7} parent=0 // pred_check_branch
    %13 = sbr.rel (0) target = $region13
  $region12: #{discriminator_forward.7} parent=0 // pred_region
    _
  $region13: #{discriminator_forward.7} parent=0 // pred_fallthru
    _
  %v15 = vld [vmem:[%s0] sm:$0xff]
  %v16 = vld [vmem:[%s0 + $0x8] sm:$0xff]
  %v17 = vld [vmem:[%s0 + $0x10] sm:$0xf]
  %v18 = vld [vmem:[%s1] sm:$0xf]
  %v19 = vld [vmem:[%s1 + $0x4] sm:$0xf]
  %v20 = vld [vmem:[%s1 + $0x8] sm:$0xf]
  %v21 = vld [vmem:[%s1 + $0xc] sm:$0xf]
  %v22 = vld [vmem:[%s1 + $0x10] sm:$0xf]
  %v23 = vld [vmem:[%s1 + $0x14] sm:$0xf]
  %v24 = vld [vmem:[%s1 + $0x18] sm:$0xf]
  %v25 = vld [vmem:[%s1 + $0x1c] sm:$0xf]
  %v26 = vld [vmem:[%s1 + $0x20] sm:$0xf]
  %v27 = vld [vmem:[%s1 + $0x24] sm:$0xf]
  %v28 = vld [vmem:[%s1 + $0x28] sm:$0xf]
  %v29 = vld [vmem:[%s1 + $0x2c] sm:$0xf]
  %v30 = vld [vmem:[%s1 + $0x30] sm:$0xf]
  %v31 = vld [vmem:[%s1 + $0x34] sm:$0xf]
  %v32 = vld [vmem:[%s1 + $0x38] sm:$0xf]
  %v33 = vld [vmem:[%s1 + $0x3c] sm:$0xf]
  %v34 = vld [vmem:[%s1 + $0x40] sm:$0xf]
  %v35 = vld [vmem:[%s1 + $0x44] sm:$0xf]
  %v36 = vld [vmem:[%s1 + $0x48] sm:$0xf]
  %v37 = vld [vmem:[%s1 + $0x4c] sm:$0xf]
  %v38 = vld [vmem:[%s1 + $0x50] sm:$0xf]
  %v39 = vld [vmem:[%s1 + $0x54] sm:$0xf]
  %v40 = vld [vmem:[%s1 + $0x58] sm:$0xf]
  %v41 = vld [vmem:[%s1 + $0x5c] sm:$0xf]
  %v42 = vld [vmem:[%s1 + $0x60] sm:$0xf]
  %v43 = vld [vmem:[%s1 + $0x64] sm:$0xf]
  %v44 = vld [vmem:[%s1 + $0x68] sm:$0xf]
  %v45 = vld [vmem:[%s1 + $0x6c] sm:$0xf]
  %v46 = vld [vmem:[%s1 + $0x70] sm:$0xf]
  %v47 = vld [vmem:[%s1 + $0x74] sm:$0xf]
  %v48 = vld [vmem:[%s1 + $0x78] sm:$0xf]
  %v49 = vld [vmem:[%s1 + $0x7c] sm:$0xf]
  %v50 = vld [vmem:[%s1 + $0x80] sm:$0xf]
  %v51 = vld [vmem:[%s1 + $0x84] sm:$0xf]
  %v52 = vld [vmem:[%s1 + $0x88] sm:$0xf]
  %v53 = vld [vmem:[%s1 + $0x8c] sm:$0xf]
  %v54 = vld [vmem:[%s1 + $0x90] sm:$0xf]
  %v55 = vld [vmem:[%s1 + $0x94] sm:$0xf]
  %v56 = vld [vmem:[%s1 + $0x98] sm:$0xf]
  %v57 = vld [vmem:[%s1 + $0x9c] sm:$0xf]
  %v58 = vld [vmem:[%s1 + $0xa0] sm:$0xf]
  %v59 = vld [vmem:[%s1 + $0xa4] sm:$0xf]
  %v60 = vld [vmem:[%s1 + $0xa8] sm:$0xf]
  %v61 = vld [vmem:[%s1 + $0xac] sm:$0xf]
  %v62 = vld [vmem:[%s1 + $0xb0] sm:$0xf]
  %v63 = vld [vmem:[%s1 + $0xb4] sm:$0xf]
  %v64 = vld [vmem:[%s1 + $0xb8] sm:$0xf]
  %v65 = vld [vmem:[%s1 + $0xbc] sm:$0xf]
  %v66 = vld [vmem:[%s1 + $0xc0] sm:$0xf]
  %v67 = vld [vmem:[%s1 + $0xc4] sm:$0xf]
  %v68 = vld [vmem:[%s1 + $0xc8] sm:$0xf]
  %v69 = vld [vmem:[%s1 + $0xcc] sm:$0xf]
  %v70 = vld [vmem:[%s1 + $0xd0] sm:$0xf]
  %v71 = vld [vmem:[%s1 + $0xd4] sm:$0xf]
  %v72 = vld [vmem:[%s1 + $0xd8] sm:$0xf]
  %v73 = vld [vmem:[%s1 + $0xdc] sm:$0xf]
  %v74 = vld [vmem:[%s1 + $0xe0] sm:$0xf]
  %v75 = vld [vmem:[%s1 + $0xe4] sm:$0xf]
  %v76 = vld [vmem:[%s1 + $0xe8] sm:$0xf]
  %v77 = vld [vmem:[%s1 + $0xec] sm:$0xf]
  %v78 = vld [vmem:[%s1 + $0xf0] sm:$0xf]
  %v79 = vld [vmem:[%s1 + $0xf4] sm:$0xf]
  %v80 = vld [vmem:[%s1 + $0xf8] sm:$0xf]
  %v81 = vld [vmem:[%s1 + $0xfc] sm:$0xf]
  %v82 = vld [vmem:[%s1 + $0x100] sm:$0xf]
  %v83 = vld [vmem:[%s1 + $0x104] sm:$0xf]
  %v84 = vld [vmem:[%s1 + $0x108] sm:$0xf]
  %v85 = vld [vmem:[%s1 + $0x10c] sm:$0xf]
  %v86 = vld [vmem:[%s1 + $0x110] sm:$0xf]
  %v87 = vld [vmem:[%s1 + $0x114] sm:$0xf]
  %v88 = vld [vmem:[%s1 + $0x118] sm:$0xf]
  %v89 = vld [vmem:[%s1 + $0x11c] sm:$0xf]
  %v90 = vld [vmem:[%s2] sm:$0x1]
  %v92 = vlaneseq
  %v93 = vshrl.u32 %v92, 7
  %v94 = vsub.s32 0, %v93
  %v95 = vrot.slane %v90, %v94
  %v100 = vunpack.c.l.b16 %v15
  %v101 = vunpack.c.h.b16 %v15
  %v102 = vunpack.c.l.b16 %v16
  %v103 = vunpack.c.h.b16 %v16
  %v104 = vunpack.c.l.b16 %v17
  %v105 = vpack.c.b16 %v100, %v100
  %v106 = vpack.c.b16 %v101, %v101
  %v107 = vpack.c.b16 %v102, %v102
  %v108 = vpack.c.b16 %v103, %v103
  %v109 = vpack.c.b16 %v104, %v104
  %v186 = vunpack.c.l.b16 %v18
  %v187 = vunpack.c.l.b16 %v19
  %v188 = vunpack.c.l.b16 %v20
  %v189 = vunpack.c.l.b16 %v21
  %v190 = vunpack.c.l.b16 %v22
  %v191 = vunpack.c.l.b16 %v23
  %v192 = vunpack.c.l.b16 %v24
  %v193 = vunpack.c.l.b16 %v25
  %v194 = vunpack.c.l.b16 %v26
  %v195 = vunpack.c.l.b16 %v27
  %v196 = vunpack.c.l.b16 %v28
  %v197 = vunpack.c.l.b16 %v29
  %v198 = vunpack.c.l.b16 %v30
  %v199 = vunpack.c.l.b16 %v31
  %v200 = vunpack.c.l.b16 %v32
  %v201 = vunpack.c.l.b16 %v33
  %v202 = vunpack.c.l.b16 %v34
  %v203 = vunpack.c.l.b16 %v35
  %v204 = vunpack.c.l.b16 %v36
  %v205 = vunpack.c.l.b16 %v37
  %v206 = vunpack.c.l.b16 %v38
  %v207 = vunpack.c.l.b16 %v39
  %v208 = vunpack.c.l.b16 %v40
  %v209 = vunpack.c.l.b16 %v41
  %v210 = vunpack.c.l.b16 %v42
  %v211 = vunpack.c.l.b16 %v43
  %v212 = vunpack.c.l.b16 %v44
  %v213 = vunpack.c.l.b16 %v45
  %v214 = vunpack.c.l.b16 %v46
  %v215 = vunpack.c.l.b16 %v47
  %v216 = vunpack.c.l.b16 %v48
  %v217 = vunpack.c.l.b16 %v49
  %v218 = vunpack.c.l.b16 %v50
  %v219 = vunpack.c.l.b16 %v51
  %v220 = vunpack.c.l.b16 %v52
  %v221 = vunpack.c.l.b16 %v53
  %v222 = vunpack.c.l.b16 %v54
  %v223 = vunpack.c.l.b16 %v55
  %v224 = vunpack.c.l.b16 %v56
  %v225 = vunpack.c.l.b16 %v57
  %v226 = vunpack.c.l.b16 %v58
  %v227 = vunpack.c.l.b16 %v59
  %v228 = vunpack.c.l.b16 %v60
  %v229 = vunpack.c.l.b16 %v61
  %v230 = vunpack.c.l.b16 %v62
  %v231 = vunpack.c.l.b16 %v63
  %v232 = vunpack.c.l.b16 %v64
  %v233 = vunpack.c.l.b16 %v65
  %v234 = vunpack.c.l.b16 %v66
  %v235 = vunpack.c.l.b16 %v67
  %v236 = vunpack.c.l.b16 %v68
  %v237 = vunpack.c.l.b16 %v69
  %v238 = vunpack.c.l.b16 %v70
  %v239 = vunpack.c.l.b16 %v71
  %v240 = vunpack.c.l.b16 %v72
  %v241 = vunpack.c.l.b16 %v73
  %v242 = vunpack.c.l.b16 %v74
  %v243 = vunpack.c.l.b16 %v75
  %v244 = vunpack.c.l.b16 %v76
  %v245 = vunpack.c.l.b16 %v77
  %v246 = vunpack.c.l.b16 %v78
  %v247 = vunpack.c.l.b16 %v79
  %v248 = vunpack.c.l.b16 %v80
  %v249 = vunpack.c.l.b16 %v81
  %v250 = vunpack.c.l.b16 %v82
  %v251 = vunpack.c.l.b16 %v83
  %v252 = vunpack.c.l.b16 %v84
  %v253 = vunpack.c.l.b16 %v85
  %v254 = vunpack.c.l.b16 %v86
  %v255 = vunpack.c.l.b16 %v87
  %v256 = vunpack.c.l.b16 %v88
  %v257 = vunpack.c.l.b16 %v89
  %v258 = vpack.c.b16 %v187, %v186
  %v259 = vpack.c.b16 %v189, %v188
  %v260 = vpack.c.b16 %v191, %v190
  %v261 = vpack.c.b16 %v193, %v192
  %v262 = vpack.c.b16 %v195, %v194
  %v263 = vpack.c.b16 %v197, %v196
  %v264 = vpack.c.b16 %v199, %v198
  %v265 = vpack.c.b16 %v201, %v200
  %v266 = vpack.c.b16 %v203, %v202
  %v267 = vpack.c.b16 %v205, %v204
  %v268 = vpack.c.b16 %v207, %v206
  %v269 = vpack.c.b16 %v209, %v208
  %v270 = vpack.c.b16 %v211, %v210
  %v271 = vpack.c.b16 %v213, %v212
  %v272 = vpack.c.b16 %v215, %v214
  %v273 = vpack.c.b16 %v217, %v216
  %v274 = vpack.c.b16 %v219, %v218
  %v275 = vpack.c.b16 %v221, %v220
  %v276 = vpack.c.b16 %v223, %v222
  %v277 = vpack.c.b16 %v225, %v224
  %v278 = vpack.c.b16 %v227, %v226
  %v279 = vpack.c.b16 %v229, %v228
  %v280 = vpack.c.b16 %v231, %v230
  %v281 = vpack.c.b16 %v233, %v232
  %v282 = vpack.c.b16 %v235, %v234
  %v283 = vpack.c.b16 %v237, %v236
  %v284 = vpack.c.b16 %v239, %v238
  %v285 = vpack.c.b16 %v241, %v240
  %v286 = vpack.c.b16 %v243, %v242
  %v287 = vpack.c.b16 %v245, %v244
  %v288 = vpack.c.b16 %v247, %v246
  %v289 = vpack.c.b16 %v249, %v248
  %v290 = vpack.c.b16 %v251, %v250
  %v291 = vpack.c.b16 %v253, %v252
  %v292 = vpack.c.b16 %v255, %v254
  %v293 = vpack.c.b16 %v257, %v256
  %vm330 = vcmask 523264
  %v332 = vsel %vm330, %v109, 0
  %334 = vmatprep.subr.bf16.mxu0 0
  %335 = vmatpush1.bf16.msra.mxu0 %v265
  %336 = vmatprep.subr.bf16.mxu0 0
  %337 = vmatpush1.bf16.msra.mxu0 %v264
  %338 = vmatprep.subr.bf16.mxu0 0
  %339 = vmatpush1.bf16.msra.mxu0 %v263
  %340 = vmatprep.subr.bf16.mxu0 0
  %341 = vmatpush1.bf16.msra.mxu0 %v262
  %342 = vmatprep.subr.bf16.mxu0 0
  %343 = vmatpush1.bf16.msra.mxu0 %v261
  %344 = vmatprep.subr.bf16.mxu0 0
  %345 = vmatpush1.bf16.msra.mxu0 %v260
  %346 = vmatprep.subr.bf16.mxu0 0
  %347 = vmatpush1.bf16.msra.mxu0 %v259
  %348 = vmatprep.subr.bf16.mxu0 0
  %349 = vmatpush1.bf16.msra.mxu0 %v258
  %350 = vmatprep.subr.bf16.mxu0 0
  %351 = vmatpush2.bf16.msra.mxu0 %v273
  %352 = vmatprep.subr.bf16.mxu0 0
  %353 = vmatpush2.bf16.msra.mxu0 %v272
  %354 = vmatprep.subr.bf16.mxu0 0
  %355 = vmatpush2.bf16.msra.mxu0 %v271
  %356 = vmatprep.subr.bf16.mxu0 0
  %357 = vmatpush2.bf16.msra.mxu0 %v270
  %358 = vmatprep.subr.bf16.mxu0 0
  %359 = vmatpush2.bf16.msra.mxu0 %v269
  %360 = vmatprep.subr.bf16.mxu0 0
  %361 = vmatpush2.bf16.msra.mxu0 %v268
  %362 = vmatprep.subr.bf16.mxu0 0
  %363 = vmatpush2.bf16.msra.mxu0 %v267
  %364 = vmatprep.subr.bf16.mxu0 0
  %365 = vmatpush2.bf16.msra.mxu0 %v266
  %366 = vmatprep.mubr.bf16.mxu0 %v106
  %367 = vmatmul.mubr.bf16.gmra.mxu0 %v105
  %v368 = vpop.f32.mrf.mxu0
  %v369 = vadd.f32 %v95, %v368
  %v370 = vpop.f32.mrf.mxu0
  %v371 = vpop.f32.mrf.mxu0
  %v372 = vpop.f32.mrf.mxu0
  %373 = vdwg.mxu0
  %374 = vmatprep.subr.bf16.mxu0 0
  %375 = vmatpush1.bf16.msra.mxu0 %v281
  %376 = vmatprep.subr.bf16.mxu0 0
  %377 = vmatpush1.bf16.msra.mxu0 %v280
  %378 = vmatprep.subr.bf16.mxu0 0
  %379 = vmatpush1.bf16.msra.mxu0 %v279
  %380 = vmatprep.subr.bf16.mxu0 0
  %381 = vmatpush1.bf16.msra.mxu0 %v278
  %382 = vmatprep.subr.bf16.mxu0 0
  %383 = vmatpush1.bf16.msra.mxu0 %v277
  %384 = vmatprep.subr.bf16.mxu0 0
  %385 = vmatpush1.bf16.msra.mxu0 %v276
  %386 = vmatprep.subr.bf16.mxu0 0
  %387 = vmatpush1.bf16.msra.mxu0 %v275
  %388 = vmatprep.subr.bf16.mxu0 0
  %389 = vmatpush1.bf16.msra.mxu0 %v274
  %390 = vmatprep.subr.bf16.mxu0 0
  %391 = vmatpush2.bf16.msra.mxu0 %v289
  %392 = vmatprep.subr.bf16.mxu0 0
  %393 = vmatpush2.bf16.msra.mxu0 %v288
  %394 = vmatprep.subr.bf16.mxu0 0
  %395 = vmatpush2.bf16.msra.mxu0 %v287
  %396 = vmatprep.subr.bf16.mxu0 0
  %397 = vmatpush2.bf16.msra.mxu0 %v286
  %398 = vmatprep.subr.bf16.mxu0 0
  %399 = vmatpush2.bf16.msra.mxu0 %v285
  %400 = vmatprep.subr.bf16.mxu0 0
  %401 = vmatpush2.bf16.msra.mxu0 %v284
  %402 = vmatprep.subr.bf16.mxu0 0
  %403 = vmatpush2.bf16.msra.mxu0 %v283
  %404 = vmatprep.subr.bf16.mxu0 0
  %405 = vmatpush2.bf16.msra.mxu0 %v282
  %406 = vmatprep.mubr.bf16.mxu0 %v108
  %407 = vmatmul.mubr.bf16.gmra.mxu0 %v107
  %v408 = vpop.f32.mrf.mxu0
  %v409 = vadd.f32 %v369, %v408
  %v410 = vpop.f32.mrf.mxu0
  %v411 = vpop.f32.mrf.mxu0
  %v412 = vpop.f32.mrf.mxu0
  %413 = vdwg.mxu0
  %414 = vmatprep.subr.bf16.mxu0 0
  %415 = vmatpush1.bf16.msra.mxu0 0
  %416 = vmatprep.subr.bf16.mxu0 0
  %417 = vmatpush1.bf16.msra.mxu0 0
  %418 = vmatprep.subr.bf16.mxu0 0
  %419 = vmatpush1.bf16.msra.mxu0 0
  %420 = vmatprep.subr.bf16.mxu0 0
  %421 = vmatpush1.bf16.msra.mxu0 0
  %422 = vmatprep.subr.bf16.mxu0 0
  %423 = vmatpush1.bf16.msra.mxu0 %v293
  %424 = vmatprep.subr.bf16.mxu0 0
  %425 = vmatpush1.bf16.msra.mxu0 %v292
  %426 = vmatprep.subr.bf16.mxu0 0
  %427 = vmatpush1.bf16.msra.mxu0 %v291
  %428 = vmatprep.subr.bf16.mxu0 0
  %429 = vmatpush1.bf16.msra.mxu0 %v290
  %430 = vmatprep.subr.bf16.mxu0 0
  %431 = vmatpush2.bf16.msra.mxu0 0
  %432 = vmatprep.subr.bf16.mxu0 0
  %433 = vmatpush2.bf16.msra.mxu0 0
  %434 = vmatprep.subr.bf16.mxu0 0
  %435 = vmatpush2.bf16.msra.mxu0 0
  %436 = vmatprep.subr.bf16.mxu0 0
  %437 = vmatpush2.bf16.msra.mxu0 0
  %438 = vmatprep.subr.bf16.mxu0 0
  %439 = vmatpush2.bf16.msra.mxu0 0
  %440 = vmatprep.subr.bf16.mxu0 0
  %441 = vmatpush2.bf16.msra.mxu0 0
  %442 = vmatprep.subr.bf16.mxu0 0
  %443 = vmatpush2.bf16.msra.mxu0 0
  %444 = vmatprep.subr.bf16.mxu0 0
  %445 = vmatpush2.bf16.msra.mxu0 0
  %446 = vmatprep.mubr.bf16.mxu0 0
  %447 = vmatmul.mubr.bf16.gmra.mxu0 %v332
  %v448 = vpop.f32.mrf.mxu0
  %v449 = vadd.f32 %v409, %v448
  %v450 = vpop.f32.mrf.mxu0
  %v451 = vpop.f32.mrf.mxu0
  %v452 = vpop.f32.mrf.mxu0
  %453 = vdwg.mxu0
  %vm454 = vcmp.gt.f32.partialorder %v449, 0.0
  %v455 = vmul.f32 %v449, 0.2
  %v456 = vsel %vm454, %v449, %v455
  %v457 = vpack.c.bf16 %v456, %v456
  %458 = vst [vmem:[%s3] sm:$0xf] %v457
  // Predicated region
  $region14: #{discriminator_forward.7} parent=0 // pred_check
    _
  $region15: #{discriminator_forward.7} parent=0 // pred_check_branch
    %460 = sbr.rel (0) target = $region17
  $region16: #{discriminator_forward.7} parent=0 // pred_region
    _
  $region17: #{discriminator_forward.7} parent=0 // pred_fallthru
    _
  // Predicated region
  $region18: #{discriminator_forward.7} parent=0 // pred_check
    _
  $region19: #{discriminator_forward.7} parent=0 // pred_check_branch
    %462 = sbr.rel (0) target = $region21
  $region20: #{discriminator_forward.7} parent=0 // pred_region
    _
  $region21: #{discriminator_forward.7} parent=0 // pred_fallthru
    _

// kernel: discriminator_forward.8
$region0: #{discriminator_forward.8}
  #allocation0 [shape = 'u32[]', space=smem, size = 0x4, offset = 0x4, fixed_abs, tag = 'smem constant byte address 0x4 - core index']
  #allocation1 [shape = 'u32[144,128]{1,0:T(1,128)}', space=vmem, size = 0x12000, scoped, tag = 'internal scratch']
  %s0 = inlined_call_operand.vmem [shape: bf16[2,1152], index: 0, kind: input, shape index: {}]
  %s1 = inlined_call_operand.vmem [shape: bf16[1152,256], index: 1, kind: input, shape index: {}]
  %s2 = inlined_call_operand.vmem [shape: f32[1,256], index: 2, kind: input, shape index: {}]
  %s3 = inlined_call_operand.vmem [shape: bf16[2,256], index: 3, kind: output, shape index: {}]
  %s4 = sld [smem:[#allocation0]]
  $region22: #{discriminator_forward.8} parent=0
    _
  %s6 = ssub.s32 1, %s4
  %s7 = scalar_select 0, %s6, %s4
  // Predicated region
  $region2: #{discriminator_forward.8} parent=0 // pred_check
    _
  $region3: #{discriminator_forward.8} parent=0 // pred_check_branch
    %9 = sbr.rel (0) target = $region5
  $region4: #{discriminator_forward.8} parent=0 // pred_region
    _
  $region5: #{discriminator_forward.8} parent=0 // pred_fallthru
    _
  // Predicated region
  $region6: #{discriminator_forward.8} parent=0 // pred_check
    _
  $region7: #{discriminator_forward.8} parent=0 // pred_check_branch
    %11 = sbr.rel (0) target = $region9
  $region8: #{discriminator_forward.8} parent=0 // pred_region
    _
  $region9: #{discriminator_forward.8} parent=0 // pred_fallthru
    _
  // Predicated region
  $region10: #{discriminator_forward.8} parent=0 // pred_check
    _
  $region11: #{discriminator_forward.8} parent=0 // pred_check_branch
    %13 = sbr.rel (0) target = $region13
  $region12: #{discriminator_forward.8} parent=0 // pred_region
    _
  $region13: #{discriminator_forward.8} parent=0 // pred_fallthru
    _
  %v15 = vld [vmem:[%s0] sm:$0xff]
  %v16 = vld [vmem:[%s0 + $0x8] sm:$0x1]
  %v17 = vld [vmem:[%s1] sm:$0xff]
  %v18 = vld [vmem:[%s1 + $0x8] sm:$0xff]
  %v19 = vld [vmem:[%s1 + $0x10] sm:$0xff]
  %v20 = vld [vmem:[%s1 + $0x18] sm:$0xff]
  %v21 = vld [vmem:[%s1 + $0x20] sm:$0xff]
  %v22 = vld [vmem:[%s1 + $0x28] sm:$0xff]
  %v23 = vld [vmem:[%s1 + $0x30] sm:$0xff]
  %v24 = vld [vmem:[%s1 + $0x38] sm:$0xff]
  %v25 = vld [vmem:[%s1 + $0x40] sm:$0xff]
  %v26 = vld [vmem:[%s1 + $0x48] sm:$0xff]
  %v27 = vld [vmem:[%s1 + $0x50] sm:$0xff]
  %v28 = vld [vmem:[%s1 + $0x58] sm:$0xff]
  %v29 = vld [vmem:[%s1 + $0x60] sm:$0xff]
  %v30 = vld [vmem:[%s1 + $0x68] sm:$0xff]
  %v31 = vld [vmem:[%s1 + $0x70] sm:$0xff]
  %v32 = vld [vmem:[%s1 + $0x78] sm:$0xff]
  %v33 = vld [vmem:[%s1 + $0x80] sm:$0xff]
  %v34 = vld [vmem:[%s1 + $0x88] sm:$0xff]
  %v35 = vld [vmem:[%s1 + $0x90] sm:$0xff]
  %v36 = vld [vmem:[%s1 + $0x98] sm:$0xff]
  %v37 = vld [vmem:[%s1 + $0xa0] sm:$0xff]
  %v38 = vld [vmem:[%s1 + $0xa8] sm:$0xff]
  %v39 = vld [vmem:[%s1 + $0xb0] sm:$0xff]
  %v40 = vld [vmem:[%s1 + $0xb8] sm:$0xff]
  %v41 = vld [vmem:[%s1 + $0xc0] sm:$0xff]
  %v42 = vld [vmem:[%s1 + $0xc8] sm:$0xff]
  %v43 = vld [vmem:[%s1 + $0xd0] sm:$0xff]
  %v44 = vld [vmem:[%s1 + $0xd8] sm:$0xff]
  %v45 = vld [vmem:[%s1 + $0xe0] sm:$0xff]
  %v46 = vld [vmem:[%s1 + $0xe8] sm:$0xff]
  %v47 = vld [vmem:[%s1 + $0xf0] sm:$0xff]
  %v48 = vld [vmem:[%s1 + $0xf8] sm:$0xff]
  %v49 = vld [vmem:[%s1 + $0x100] sm:$0xff]
  %v50 = vld [vmem:[%s1 + $0x108] sm:$0xff]
  %v51 = vld [vmem:[%s1 + $0x110] sm:$0xff]
  %v52 = vld [vmem:[%s1 + $0x118] sm:$0xff]
  %v53 = vld [vmem:[%s1 + $0x120] sm:$0xff]
  %v54 = vld [vmem:[%s1 + $0x128] sm:$0xff]
  %v55 = vld [vmem:[%s1 + $0x130] sm:$0xff]
  %v56 = vld [vmem:[%s1 + $0x138] sm:$0xff]
  %v57 = vld [vmem:[%s1 + $0x140] sm:$0xff]
  %v58 = vld [vmem:[%s1 + $0x148] sm:$0xff]
  %v59 = vld [vmem:[%s1 + $0x150] sm:$0xff]
  %v60 = vld [vmem:[%s1 + $0x158] sm:$0xff]
  %v61 = vld [vmem:[%s1 + $0x160] sm:$0xff]
  %v62 = vld [vmem:[%s1 + $0x168] sm:$0xff]
  %v63 = vld [vmem:[%s1 + $0x170] sm:$0xff]
  %v64 = vld [vmem:[%s1 + $0x178] sm:$0xff]
  %v65 = vld [vmem:[%s1 + $0x180] sm:$0xff]
  %v66 = vld [vmem:[%s1 + $0x188] sm:$0xff]
  %v67 = vld [vmem:[%s1 + $0x190] sm:$0xff]
  %v68 = vld [vmem:[%s1 + $0x198] sm:$0xff]
  %v69 = vld [vmem:[%s1 + $0x1a0] sm:$0xff]
  %v70 = vld [vmem:[%s1 + $0x1a8] sm:$0xff]
  %v71 = vld [vmem:[%s1 + $0x1b0] sm:$0xff]
  %v72 = vld [vmem:[%s1 + $0x1b8] sm:$0xff]
  %v73 = vld [vmem:[%s1 + $0x1c0] sm:$0xff]
  %v74 = vld [vmem:[%s1 + $0x1c8] sm:$0xff]
  %v75 = vld [vmem:[%s1 + $0x1d0] sm:$0xff]
  %v76 = vld [vmem:[%s1 + $0x1d8] sm:$0xff]
  %v77 = vld [vmem:[%s1 + $0x1e0] sm:$0xff]
  %v78 = vld [vmem:[%s1 + $0x1e8] sm:$0xff]
  %v79 = vld [vmem:[%s1 + $0x1f0] sm:$0xff]
  %v80 = vld [vmem:[%s1 + $0x1f8] sm:$0xff]
  %v81 = vld [vmem:[%s1 + $0x200] sm:$0xff]
  %v82 = vld [vmem:[%s1 + $0x208] sm:$0xff]
  %v83 = vld [vmem:[%s1 + $0x210] sm:$0xff]
  %v84 = vld [vmem:[%s1 + $0x218] sm:$0xff]
  %v85 = vld [vmem:[%s1 + $0x220] sm:$0xff]
  %v86 = vld [vmem:[%s1 + $0x228] sm:$0xff]
  %v87 = vld [vmem:[%s1 + $0x230] sm:$0xff]
  %v88 = vld [vmem:[%s1 + $0x238] sm:$0xff]
  %v89 = vld [vmem:[%s1 + $0x240] sm:$0xff]
  %v90 = vld [vmem:[%s1 + $0x248] sm:$0xff]
  %v91 = vld [vmem:[%s1 + $0x250] sm:$0xff]
  %v92 = vld [vmem:[%s1 + $0x258] sm:$0xff]
  %v93 = vld [vmem:[%s1 + $0x260] sm:$0xff]
  %v94 = vld [vmem:[%s1 + $0x268] sm:$0xff]
  %v95 = vld [vmem:[%s1 + $0x270] sm:$0xff]
  %v96 = vld [vmem:[%s1 + $0x278] sm:$0xff]
  %v97 = vld [vmem:[%s1 + $0x280] sm:$0xff]
  %v98 = vld [vmem:[%s1 + $0x288] sm:$0xff]
  %v99 = vld [vmem:[%s1 + $0x290] sm:$0xff]
  %v100 = vld [vmem:[%s1 + $0x298] sm:$0xff]
  %v101 = vld [vmem:[%s1 + $0x2a0] sm:$0xff]
  %v102 = vld [vmem:[%s1 + $0x2a8] sm:$0xff]
  %v103 = vld [vmem:[%s1 + $0x2b0] sm:$0xff]
  %v104 = vld [vmem:[%s1 + $0x2b8] sm:$0xff]
  %v105 = vld [vmem:[%s1 + $0x2c0] sm:$0xff]
  %v106 = vld [vmem:[%s1 + $0x2c8] sm:$0xff]
  %v107 = vld [vmem:[%s1 + $0x2d0] sm:$0xff]
  %v108 = vld [vmem:[%s1 + $0x2d8] sm:$0xff]
  %v109 = vld [vmem:[%s1 + $0x2e0] sm:$0xff]
  %v110 = vld [vmem:[%s1 + $0x2e8] sm:$0xff]
  %v111 = vld [vmem:[%s1 + $0x2f0] sm:$0xff]
  %v112 = vld [vmem:[%s1 + $0x2f8] sm:$0xff]
  %v113 = vld [vmem:[%s1 + $0x300] sm:$0xff]
  %v114 = vld [vmem:[%s1 + $0x308] sm:$0xff]
  %v115 = vld [vmem:[%s1 + $0x310] sm:$0xff]
  %v116 = vld [vmem:[%s1 + $0x318] sm:$0xff]
  %v117 = vld [vmem:[%s1 + $0x320] sm:$0xff]
  %v118 = vld [vmem:[%s1 + $0x328] sm:$0xff]
  %v119 = vld [vmem:[%s1 + $0x330] sm:$0xff]
  %v120 = vld [vmem:[%s1 + $0x338] sm:$0xff]
  %v121 = vld [vmem:[%s1 + $0x340] sm:$0xff]
  %v122 = vld [vmem:[%s1 + $0x348] sm:$0xff]
  %v123 = vld [vmem:[%s1 + $0x350] sm:$0xff]
  %v124 = vld [vmem:[%s1 + $0x358] sm:$0xff]
  %v125 = vld [vmem:[%s1 + $0x360] sm:$0xff]
  %v126 = vld [vmem:[%s1 + $0x368] sm:$0xff]
  %v127 = vld [vmem:[%s1 + $0x370] sm:$0xff]
  %v128 = vld [vmem:[%s1 + $0x378] sm:$0xff]
  %v129 = vld [vmem:[%s1 + $0x380] sm:$0xff]
  %v130 = vld [vmem:[%s1 + $0x388] sm:$0xff]
  %v131 = vld [vmem:[%s1 + $0x390] sm:$0xff]
  %v132 = vld [vmem:[%s1 + $0x398] sm:$0xff]
  %v133 = vld [vmem:[%s1 + $0x3a0] sm:$0xff]
  %v134 = vld [vmem:[%s1 + $0x3a8] sm:$0xff]
  %v135 = vld [vmem:[%s1 + $0x3b0] sm:$0xff]
  %v136 = vld [vmem:[%s1 + $0x3b8] sm:$0xff]
  %v137 = vld [vmem:[%s1 + $0x3c0] sm:$0xff]
  %v138 = vld [vmem:[%s1 + $0x3c8] sm:$0xff]
  %v139 = vld [vmem:[%s1 + $0x3d0] sm:$0xff]
  %v140 = vld [vmem:[%s1 + $0x3d8] sm:$0xff]
  %v141 = vld [vmem:[%s1 + $0x3e0] sm:$0xff]
  %v142 = vld [vmem:[%s1 + $0x3e8] sm:$0xff]
  %v143 = vld [vmem:[%s1 + $0x3f0] sm:$0xff]
  %v144 = vld [vmem:[%s1 + $0x3f8] sm:$0xff]
  %v145 = vld [vmem:[%s1 + $0x400] sm:$0xff]
  %v146 = vld [vmem:[%s1 + $0x408] sm:$0xff]
  %v147 = vld [vmem:[%s1 + $0x410] sm:$0xff]
  %v148 = vld [vmem:[%s1 + $0x418] sm:$0xff]
  %v149 = vld [vmem:[%s1 + $0x420] sm:$0xff]
  %v150 = vld [vmem:[%s1 + $0x428] sm:$0xff]
  %v151 = vld [vmem:[%s1 + $0x430] sm:$0xff]
  %v152 = vld [vmem:[%s1 + $0x438] sm:$0xff]
  %v153 = vld [vmem:[%s1 + $0x440] sm:$0xff]
  %v154 = vld [vmem:[%s1 + $0x448] sm:$0xff]
  %v155 = vld [vmem:[%s1 + $0x450] sm:$0xff]
  %v156 = vld [vmem:[%s1 + $0x458] sm:$0xff]
  %v157 = vld [vmem:[%s1 + $0x460] sm:$0xff]
  %v158 = vld [vmem:[%s1 + $0x468] sm:$0xff]
  %v159 = vld [vmem:[%s1 + $0x470] sm:$0xff]
  %v160 = vld [vmem:[%s1 + $0x478] sm:$0xff]
  %v161 = vld [vmem:[%s2] sm:$0x3]
  %v163 = vlaneseq
  %v164 = vshrl.u32 %v163, 7
  %v165 = vsub.s32 0, %v164
  %v166 = vrot.slane %v161, %v165
  %v167 = vlaneseq
  %v168 = vshrl.u32 %v167, 7
  %v169 = vsub.s32 1, %v168
  %v170 = vrot.slane %v161, %v169
  %v175 = vcombine.high %v15, %v15
  %v177 = vunpack.c.l.s4 1966171168
  %v178 = vunpack.c.0.s8 %v177
  %v179 = vlaneseq
  %v180 = vshrl.u32 %v179, 7
  %v181 = vsub.s32 %v178, %v180
  %v182 = vrot.slane %v15, %v181
  %v184 = vunpack.c.l.s4 1966171168
  %v185 = vunpack.c.0.s8 %v184
  %v186 = vlaneseq
  %v187 = vshrl.u32 %v186, 7
  %v188 = vsub.s32 %v185, %v187
  %v189 = vrot.slane %v175, %v188
  %v190 = vcombine.high %v182, %v182
  %v191 = vcombine.high %v189, %v189
  %v193 = vunpack.c.l.s4 1966171168
  %v194 = vunpack.c.0.s8 %v193
  %v195 = vlaneseq
  %v196 = vshrl.u32 %v195, 7
  %v197 = vsub.s32 %v194, %v196
  %v198 = vrot.slane %v182, %v197
  %v200 = vunpack.c.l.s4 1966171168
  %v201 = vunpack.c.0.s8 %v200
  %v202 = vlaneseq
  %v203 = vshrl.u32 %v202, 7
  %v204 = vsub.s32 %v201, %v203
  %v205 = vrot.slane %v189, %v204
  %v207 = vunpack.c.l.s4 1966171168
  %v208 = vunpack.c.0.s8 %v207
  %v209 = vlaneseq
  %v210 = vshrl.u32 %v209, 7
  %v211 = vsub.s32 %v208, %v210
  %v212 = vrot.slane %v190, %v211
  %v214 = vunpack.c.l.s4 1966171168
  %v215 = vunpack.c.0.s8 %v214
  %v216 = vlaneseq
  %v217 = vshrl.u32 %v216, 7
  %v218 = vsub.s32 %v215, %v217
  %v219 = vrot.slane %v191, %v218
  %v220 = vcombine.high %v198, %v198
  %v221 = vcombine.high %v205, %v205
  %v222 = vcombine.high %v212, %v212
  %v223 = vcombine.high %v219, %v219
  %v225 = vunpack.c.l.s4 1966171168
  %v226 = vunpack.c.0.s8 %v225
  %v227 = vlaneseq
  %v228 = vshrl.u32 %v227, 7
  %v229 = vsub.s32 %v226, %v228
  %v230 = vrot.slane %v16, %v229
  %v232 = vunpack.c.l.s4 1966171168
  %v233 = vunpack.c.0.s8 %v232
  %v234 = vlaneseq
  %v235 = vshrl.u32 %v234, 7
  %v236 = vsub.s32 %v233, %v235
  %v237 = vrot.slane %v230, %v236
  %v391 = vunpack.c.l.b16 %v17
  %v392 = vunpack.c.h.b16 %v17
  %v393 = vunpack.c.l.b16 %v18
  %v394 = vunpack.c.h.b16 %v18
  %v395 = vunpack.c.l.b16 %v19
  %v396 = vunpack.c.h.b16 %v19
  %v397 = vunpack.c.l.b16 %v20
  %v398 = vunpack.c.h.b16 %v20
  %v399 = vunpack.c.l.b16 %v21
  %v400 = vunpack.c.h.b16 %v21
  %v401 = vunpack.c.l.b16 %v22
  %v402 = vunpack.c.h.b16 %v22
  %v403 = vunpack.c.l.b16 %v23
  %v404 = vunpack.c.h.b16 %v23
  %v405 = vunpack.c.l.b16 %v24
  %v406 = vunpack.c.h.b16 %v24
  %v407 = vunpack.c.l.b16 %v25
  %v408 = vunpack.c.h.b16 %v25
  %v409 = vunpack.c.l.b16 %v26
  %v410 = vunpack.c.h.b16 %v26
  %v411 = vunpack.c.l.b16 %v27
  %v412 = vunpack.c.h.b16 %v27
  %v413 = vunpack.c.l.b16 %v28
  %v414 = vunpack.c.h.b16 %v28
  %v415 = vunpack.c.l.b16 %v29
  %v416 = vunpack.c.h.b16 %v29
  %v417 = vunpack.c.l.b16 %v30
  %v418 = vunpack.c.h.b16 %v30
  %v419 = vunpack.c.l.b16 %v31
  %v420 = vunpack.c.h.b16 %v31
  %v421 = vunpack.c.l.b16 %v32
  %v422 = vunpack.c.h.b16 %v32
  %v423 = vunpack.c.l.b16 %v33
  %v424 = vunpack.c.h.b16 %v33
  %v425 = vunpack.c.l.b16 %v34
  %v426 = vunpack.c.h.b16 %v34
  %v427 = vunpack.c.l.b16 %v35
  %v428 = vunpack.c.h.b16 %v35
  %v429 = vunpack.c.l.b16 %v36
  %v430 = vunpack.c.h.b16 %v36
  %v431 = vunpack.c.l.b16 %v37
  %v432 = vunpack.c.h.b16 %v37
  %v433 = vunpack.c.l.b16 %v38
  %v434 = vunpack.c.h.b16 %v38
  %v435 = vunpack.c.l.b16 %v39
  %v436 = vunpack.c.h.b16 %v39
  %v437 = vunpack.c.l.b16 %v40
  %v438 = vunpack.c.h.b16 %v40
  %v439 = vunpack.c.l.b16 %v41
  %v440 = vunpack.c.h.b16 %v41
  %v441 = vunpack.c.l.b16 %v42
  %v442 = vunpack.c.h.b16 %v42
  %v443 = vunpack.c.l.b16 %v43
  %v444 = vunpack.c.h.b16 %v43
  %v445 = vunpack.c.l.b16 %v44
  %v446 = vunpack.c.h.b16 %v44
  %v447 = vunpack.c.l.b16 %v45
  %v448 = vunpack.c.h.b16 %v45
  %v449 = vunpack.c.l.b16 %v46
  %v450 = vunpack.c.h.b16 %v46
  %v451 = vunpack.c.l.b16 %v47
  %v452 = vunpack.c.h.b16 %v47
  %v453 = vunpack.c.l.b16 %v48
  %v454 = vunpack.c.h.b16 %v48
  %v455 = vunpack.c.l.b16 %v49
  %v456 = vunpack.c.h.b16 %v49
  %v457 = vunpack.c.l.b16 %v50
  %v458 = vunpack.c.h.b16 %v50
  %v459 = vunpack.c.l.b16 %v51
  %v460 = vunpack.c.h.b16 %v51
  %v461 = vunpack.c.l.b16 %v52
  %v462 = vunpack.c.h.b16 %v52
  %v463 = vunpack.c.l.b16 %v53
  %v464 = vunpack.c.h.b16 %v53
  %v465 = vunpack.c.l.b16 %v54
  %v466 = vunpack.c.h.b16 %v54
  %v467 = vunpack.c.l.b16 %v55
  %v468 = vunpack.c.h.b16 %v55
  %v469 = vunpack.c.l.b16 %v56
  %v470 = vunpack.c.h.b16 %v56
  %v471 = vunpack.c.l.b16 %v57
  %v472 = vunpack.c.h.b16 %v57
  %v473 = vunpack.c.l.b16 %v58
  %v474 = vunpack.c.h.b16 %v58
  %v475 = vunpack.c.l.b16 %v59
  %v476 = vunpack.c.h.b16 %v59
  %v477 = vunpack.c.l.b16 %v60
  %v478 = vunpack.c.h.b16 %v60
  %v479 = vunpack.c.l.b16 %v61
  %v480 = vunpack.c.h.b16 %v61
  %v481 = vunpack.c.l.b16 %v62
  %v482 = vunpack.c.h.b16 %v62
  %v483 = vunpack.c.l.b16 %v63
  %v484 = vunpack.c.h.b16 %v63
  %v485 = vunpack.c.l.b16 %v64
  %v486 = vunpack.c.h.b16 %v64
  %v487 = vunpack.c.l.b16 %v65
  %v488 = vunpack.c.h.b16 %v65
  %v489 = vunpack.c.l.b16 %v66
  %v490 = vunpack.c.h.b16 %v66
  %v491 = vunpack.c.l.b16 %v67
  %v492 = vunpack.c.h.b16 %v67
  %v493 = vunpack.c.l.b16 %v68
  %v494 = vunpack.c.h.b16 %v68
  %v495 = vunpack.c.l.b16 %v69
  %v496 = vunpack.c.h.b16 %v69
  %v497 = vunpack.c.l.b16 %v70
  %v498 = vunpack.c.h.b16 %v70
  %v499 = vunpack.c.l.b16 %v71
  %v500 = vunpack.c.h.b16 %v71
  %v501 = vunpack.c.l.b16 %v72
  %v502 = vunpack.c.h.b16 %v72
  %v503 = vunpack.c.l.b16 %v73
  %v504 = vunpack.c.h.b16 %v73
  %v505 = vunpack.c.l.b16 %v74
  %v506 = vunpack.c.h.b16 %v74
  %v507 = vunpack.c.l.b16 %v75
  %v508 = vunpack.c.h.b16 %v75
  %v509 = vunpack.c.l.b16 %v76
  %v510 = vunpack.c.h.b16 %v76
  %v511 = vunpack.c.l.b16 %v77
  %v512 = vunpack.c.h.b16 %v77
  %v513 = vunpack.c.l.b16 %v78
  %v514 = vunpack.c.h.b16 %v78
  %v515 = vunpack.c.l.b16 %v79
  %v516 = vunpack.c.h.b16 %v79
  %v517 = vunpack.c.l.b16 %v80
  %v518 = vunpack.c.h.b16 %v80
  %v519 = vunpack.c.l.b16 %v81
  %v520 = vunpack.c.h.b16 %v81
  %v521 = vunpack.c.l.b16 %v82
  %v522 = vunpack.c.h.b16 %v82
  %v523 = vunpack.c.l.b16 %v83
  %v524 = vunpack.c.h.b16 %v83
  %v525 = vunpack.c.l.b16 %v84
  %v526 = vunpack.c.h.b16 %v84
  %v527 = vunpack.c.l.b16 %v85
  %v528 = vunpack.c.h.b16 %v85
  %v529 = vunpack.c.l.b16 %v86
  %v530 = vunpack.c.h.b16 %v86
  %v531 = vunpack.c.l.b16 %v87
  %v532 = vunpack.c.h.b16 %v87
  %v533 = vunpack.c.l.b16 %v88
  %v534 = vunpack.c.h.b16 %v88
  %v535 = vunpack.c.l.b16 %v89
  %v536 = vunpack.c.h.b16 %v89
  %v537 = vunpack.c.l.b16 %v90
  %v538 = vunpack.c.h.b16 %v90
  %v539 = vunpack.c.l.b16 %v91
  %v540 = vunpack.c.h.b16 %v91
  %v541 = vunpack.c.l.b16 %v92
  %v542 = vunpack.c.h.b16 %v92
  %v543 = vunpack.c.l.b16 %v93
  %v544 = vunpack.c.h.b16 %v93
  %v545 = vunpack.c.l.b16 %v94
  %v546 = vunpack.c.h.b16 %v94
  %v547 = vunpack.c.l.b16 %v95
  %v548 = vunpack.c.h.b16 %v95
  %v549 = vunpack.c.l.b16 %v96
  %v550 = vunpack.c.h.b16 %v96
  %v551 = vunpack.c.l.b16 %v97
  %v552 = vunpack.c.h.b16 %v97
  %v553 = vunpack.c.l.b16 %v98
  %v554 = vunpack.c.h.b16 %v98
  %v555 = vunpack.c.l.b16 %v99
  %v556 = vunpack.c.h.b16 %v99
  %v557 = vunpack.c.l.b16 %v100
  %v558 = vunpack.c.h.b16 %v100
  %v559 = vunpack.c.l.b16 %v101
  %v560 = vunpack.c.h.b16 %v101
  %v561 = vunpack.c.l.b16 %v102
  %v562 = vunpack.c.h.b16 %v102
  %v563 = vunpack.c.l.b16 %v103
  %v564 = vunpack.c.h.b16 %v103
  %v565 = vunpack.c.l.b16 %v104
  %v566 = vunpack.c.h.b16 %v104
  %v567 = vunpack.c.l.b16 %v105
  %v568 = vunpack.c.h.b16 %v105
  %v569 = vunpack.c.l.b16 %v106
  %v570 = vunpack.c.h.b16 %v106
  %v571 = vunpack.c.l.b16 %v107
  %v572 = vunpack.c.h.b16 %v107
  %v573 = vunpack.c.l.b16 %v108
  %v574 = vunpack.c.h.b16 %v108
  %v575 = vunpack.c.l.b16 %v109
  %v576 = vunpack.c.h.b16 %v109
  %v577 = vunpack.c.l.b16 %v110
  %v578 = vunpack.c.h.b16 %v110
  %v579 = vunpack.c.l.b16 %v111
  %v580 = vunpack.c.h.b16 %v111
  %v581 = vunpack.c.l.b16 %v112
  %v582 = vunpack.c.h.b16 %v112
  %v583 = vunpack.c.l.b16 %v113
  %v584 = vunpack.c.h.b16 %v113
  %v585 = vunpack.c.l.b16 %v114
  %v586 = vunpack.c.h.b16 %v114
  %v587 = vunpack.c.l.b16 %v115
  %v588 = vunpack.c.h.b16 %v115
  %v589 = vunpack.c.l.b16 %v116
  %v590 = vunpack.c.h.b16 %v116
  %v591 = vunpack.c.l.b16 %v117
  %v592 = vunpack.c.h.b16 %v117
  %v593 = vunpack.c.l.b16 %v118
  %v594 = vunpack.c.h.b16 %v118
  %v595 = vunpack.c.l.b16 %v119
  %v596 = vunpack.c.h.b16 %v119
  %v597 = vunpack.c.l.b16 %v120
  %v598 = vunpack.c.h.b16 %v120
  %v599 = vunpack.c.l.b16 %v121
  %v600 = vunpack.c.h.b16 %v121
  %v601 = vunpack.c.l.b16 %v122
  %v602 = vunpack.c.h.b16 %v122
  %v603 = vunpack.c.l.b16 %v123
  %v604 = vunpack.c.h.b16 %v123
  %v605 = vunpack.c.l.b16 %v124
  %v606 = vunpack.c.h.b16 %v124
  %v607 = vunpack.c.l.b16 %v125
  %v608 = vunpack.c.h.b16 %v125
  %v609 = vunpack.c.l.b16 %v126
  %v610 = vunpack.c.h.b16 %v126
  %v611 = vunpack.c.l.b16 %v127
  %v612 = vunpack.c.h.b16 %v127
  %v613 = vunpack.c.l.b16 %v128
  %v614 = vunpack.c.h.b16 %v128
  %v615 = vunpack.c.l.b16 %v129
  %v616 = vunpack.c.h.b16 %v129
  %v617 = vunpack.c.l.b16 %v130
  %v618 = vunpack.c.h.b16 %v130
  %v619 = vunpack.c.l.b16 %v131
  %v620 = vunpack.c.h.b16 %v131
  %v621 = vunpack.c.l.b16 %v132
  %v622 = vunpack.c.h.b16 %v132
  %v623 = vunpack.c.l.b16 %v133
  %v624 = vunpack.c.h.b16 %v133
  %v625 = vunpack.c.l.b16 %v134
  %v626 = vunpack.c.h.b16 %v134
  %v627 = vunpack.c.l.b16 %v135
  %v628 = vunpack.c.h.b16 %v135
  %v629 = vunpack.c.l.b16 %v136
  %v630 = vunpack.c.h.b16 %v136
  %v631 = vunpack.c.l.b16 %v137
  %v632 = vunpack.c.h.b16 %v137
  %v633 = vunpack.c.l.b16 %v138
  %v634 = vunpack.c.h.b16 %v138
  %v635 = vunpack.c.l.b16 %v139
  %v636 = vunpack.c.h.b16 %v139
  %v637 = vunpack.c.l.b16 %v140
  %v638 = vunpack.c.h.b16 %v140
  %v639 = vunpack.c.l.b16 %v141
  %v640 = vunpack.c.h.b16 %v141
  %v641 = vunpack.c.l.b16 %v142
  %v642 = vunpack.c.h.b16 %v142
  %v643 = vunpack.c.l.b16 %v143
  %v644 = vunpack.c.h.b16 %v143
  %v645 = vunpack.c.l.b16 %v144
  %v646 = vunpack.c.h.b16 %v144
  %v647 = vunpack.c.l.b16 %v145
  %v648 = vunpack.c.h.b16 %v145
  %v649 = vunpack.c.l.b16 %v146
  %v650 = vunpack.c.h.b16 %v146
  %v651 = vunpack.c.l.b16 %v147
  %v652 = vunpack.c.h.b16 %v147
  %v653 = vunpack.c.l.b16 %v148
  %v654 = vunpack.c.h.b16 %v148
  %v655 = vunpack.c.l.b16 %v149
  %v656 = vunpack.c.h.b16 %v149
  %v657 = vunpack.c.l.b16 %v150
  %v658 = vunpack.c.h.b16 %v150
  %v659 = vunpack.c.l.b16 %v151
  %v660 = vunpack.c.h.b16 %v151
  %v661 = vunpack.c.l.b16 %v152
  %v662 = vunpack.c.h.b16 %v152
  %v663 = vunpack.c.l.b16 %v153
  %v664 = vunpack.c.h.b16 %v153
  %v665 = vunpack.c.l.b16 %v154
  %v666 = vunpack.c.h.b16 %v154
  %v667 = vunpack.c.l.b16 %v155
  %v668 = vunpack.c.h.b16 %v155
  %v669 = vunpack.c.l.b16 %v156
  %v670 = vunpack.c.h.b16 %v156
  %v671 = vunpack.c.l.b16 %v157
  %v672 = vunpack.c.h.b16 %v157
  %v673 = vunpack.c.l.b16 %v158
  %v674 = vunpack.c.h.b16 %v158
  %v675 = vunpack.c.l.b16 %v159
  %v676 = vunpack.c.h.b16 %v159
  %v677 = vunpack.c.l.b16 %v160
  %v678 = vunpack.c.h.b16 %v160
  %v679 = vpack.c.b16 %v393, %v391
  %v680 = vpack.c.b16 %v394, %v392
  %v681 = vpack.c.b16 %v397, %v395
  %v682 = vpack.c.b16 %v398, %v396
  %v683 = vpack.c.b16 %v401, %v399
  %v684 = vpack.c.b16 %v402, %v400
  %v685 = vpack.c.b16 %v405, %v403
  %v686 = vpack.c.b16 %v406, %v404
  %v687 = vpack.c.b16 %v409, %v407
  %v688 = vpack.c.b16 %v410, %v408
  %v689 = vpack.c.b16 %v413, %v411
  %v690 = vpack.c.b16 %v414, %v412
  %v691 = vpack.c.b16 %v417, %v415
  %v692 = vpack.c.b16 %v418, %v416
  %v693 = vpack.c.b16 %v421, %v419
  %v694 = vpack.c.b16 %v422, %v420
  %v695 = vpack.c.b16 %v425, %v423
  %v696 = vpack.c.b16 %v426, %v424
  %v697 = vpack.c.b16 %v429, %v427
  %v698 = vpack.c.b16 %v430, %v428
  %v699 = vpack.c.b16 %v433, %v431
  %v700 = vpack.c.b16 %v434, %v432
  %v701 = vpack.c.b16 %v437, %v435
  %v702 = vpack.c.b16 %v438, %v436
  %v703 = vpack.c.b16 %v441, %v439
  %v704 = vpack.c.b16 %v442, %v440
  %v705 = vpack.c.b16 %v445, %v443
  %v706 = vpack.c.b16 %v446, %v444
  %v707 = vpack.c.b16 %v449, %v447
  %v708 = vpack.c.b16 %v450, %v448
  %v709 = vpack.c.b16 %v453, %v451
  %v710 = vpack.c.b16 %v454, %v452
  %v711 = vpack.c.b16 %v457, %v455
  %v712 = vpack.c.b16 %v458, %v456
  %v713 = vpack.c.b16 %v461, %v459
  %v714 = vpack.c.b16 %v462, %v460
  %v715 = vpack.c.b16 %v465, %v463
  %v716 = vpack.c.b16 %v466, %v464
  %v717 = vpack.c.b16 %v469, %v467
  %v718 = vpack.c.b16 %v470, %v468
  %v719 = vpack.c.b16 %v473, %v471
  %v720 = vpack.c.b16 %v474, %v472
  %v721 = vpack.c.b16 %v477, %v475
  %v722 = vpack.c.b16 %v478, %v476
  %v723 = vpack.c.b16 %v481, %v479
  %v724 = vpack.c.b16 %v482, %v480
  %v725 = vpack.c.b16 %v485, %v483
  %v726 = vpack.c.b16 %v486, %v484
  %v727 = vpack.c.b16 %v489, %v487
  %v728 = vpack.c.b16 %v490, %v488
  %v729 = vpack.c.b16 %v493, %v491
  %v730 = vpack.c.b16 %v494, %v492
  %v731 = vpack.c.b16 %v497, %v495
  %v732 = vpack.c.b16 %v498, %v496
  %v733 = vpack.c.b16 %v501, %v499
  %v734 = vpack.c.b16 %v502, %v500
  %v735 = vpack.c.b16 %v505, %v503
  %v736 = vpack.c.b16 %v506, %v504
  %v737 = vpack.c.b16 %v509, %v507
  %v738 = vpack.c.b16 %v510, %v508
  %v739 = vpack.c.b16 %v513, %v511
  %v740 = vpack.c.b16 %v514, %v512
  %v741 = vpack.c.b16 %v517, %v515
  %v742 = vpack.c.b16 %v518, %v516
  %v743 = vpack.c.b16 %v521, %v519
  %v744 = vpack.c.b16 %v522, %v520
  %v745 = vpack.c.b16 %v525, %v523
  %v746 = vpack.c.b16 %v526, %v524
  %v747 = vpack.c.b16 %v529, %v527
  %v748 = vpack.c.b16 %v530, %v528
  %v749 = vpack.c.b16 %v533, %v531
  %v750 = vpack.c.b16 %v534, %v532
  %v751 = vpack.c.b16 %v537, %v535
  %v752 = vpack.c.b16 %v538, %v536
  %v753 = vpack.c.b16 %v541, %v539
  %v754 = vpack.c.b16 %v542, %v540
  %v755 = vpack.c.b16 %v545, %v543
  %v756 = vpack.c.b16 %v546, %v544
  %v757 = vpack.c.b16 %v549, %v547
  %v758 = vpack.c.b16 %v550, %v548
  %v759 = vpack.c.b16 %v553, %v551
  %v760 = vpack.c.b16 %v554, %v552
  %v761 = vpack.c.b16 %v557, %v555
  %v762 = vpack.c.b16 %v558, %v556
  %v763 = vpack.c.b16 %v561, %v559
  %v764 = vpack.c.b16 %v562, %v560
  %v765 = vpack.c.b16 %v565, %v563
  %v766 = vpack.c.b16 %v566, %v564
  %v767 = vpack.c.b16 %v569, %v567
  %v768 = vpack.c.b16 %v570, %v568
  %v769 = vpack.c.b16 %v573, %v571
  %v770 = vpack.c.b16 %v574, %v572
  %v771 = vpack.c.b16 %v577, %v575
  %v772 = vpack.c.b16 %v578, %v576
  %v773 = vpack.c.b16 %v581, %v579
  %v774 = vpack.c.b16 %v582, %v580
  %v775 = vpack.c.b16 %v585, %v583
  %v776 = vpack.c.b16 %v586, %v584
  %v777 = vpack.c.b16 %v589, %v587
  %v778 = vpack.c.b16 %v590, %v588
  %v779 = vpack.c.b16 %v593, %v591
  %v780 = vpack.c.b16 %v594, %v592
  %v781 = vpack.c.b16 %v597, %v595
  %v782 = vpack.c.b16 %v598, %v596
  %v783 = vpack.c.b16 %v601, %v599
  %v784 = vpack.c.b16 %v602, %v600
  %v785 = vpack.c.b16 %v605, %v603
  %v786 = vpack.c.b16 %v606, %v604
  %v787 = vpack.c.b16 %v609, %v607
  %v788 = vpack.c.b16 %v610, %v608
  %v789 = vpack.c.b16 %v613, %v611
  %v790 = vpack.c.b16 %v614, %v612
  %v791 = vpack.c.b16 %v617, %v615
  %v792 = vpack.c.b16 %v618, %v616
  %v793 = vpack.c.b16 %v621, %v619
  %v794 = vpack.c.b16 %v622, %v620
  %v795 = vpack.c.b16 %v625, %v623
  %v796 = vpack.c.b16 %v626, %v624
  %v797 = vpack.c.b16 %v629, %v627
  %v798 = vpack.c.b16 %v630, %v628
  %v799 = vpack.c.b16 %v633, %v631
  %v800 = vpack.c.b16 %v634, %v632
  %v801 = vpack.c.b16 %v637, %v635
  %v802 = vpack.c.b16 %v638, %v636
  %v803 = vpack.c.b16 %v641, %v639
  %v804 = vpack.c.b16 %v642, %v640
  %v805 = vpack.c.b16 %v645, %v643
  %v806 = vpack.c.b16 %v646, %v644
  %v807 = vpack.c.b16 %v649, %v647
  %v808 = vpack.c.b16 %v650, %v648
  %v809 = vpack.c.b16 %v653, %v651
  %v810 = vpack.c.b16 %v654, %v652
  %v811 = vpack.c.b16 %v657, %v655
  %v812 = vpack.c.b16 %v658, %v656
  %v813 = vpack.c.b16 %v661, %v659
  %v814 = vpack.c.b16 %v662, %v660
  %v815 = vpack.c.b16 %v665, %v663
  %v816 = vpack.c.b16 %v666, %v664
  %v817 = vpack.c.b16 %v669, %v667
  %v818 = vpack.c.b16 %v670, %v668
  %v819 = vpack.c.b16 %v673, %v671
  %v820 = vpack.c.b16 %v674, %v672
  %v821 = vpack.c.b16 %v677, %v675
  %v822 = vpack.c.b16 %v678, %v676
  %967 = vmatprep.subr.bf16.mxu0 %v694
  %968 = vmatpush1.bf16.msra.mxu0 %v693
  %969 = vmatprep.subr.bf16.mxu0 %v692
  %970 = vmatpush1.bf16.msra.mxu0 %v691
  %971 = vmatprep.subr.bf16.mxu0 %v690
  %972 = vmatpush1.bf16.msra.mxu0 %v689
  %973 = vmatprep.subr.bf16.mxu0 %v688
  %974 = vmatpush1.bf16.msra.mxu0 %v687
  %975 = vmatprep.subr.bf16.mxu0 %v686
  %976 = vmatpush1.bf16.msra.mxu0 %v685
  %977 = vmatprep.subr.bf16.mxu0 %v684
  %978 = vmatpush1.bf16.msra.mxu0 %v683
  %979 = vmatprep.subr.bf16.mxu0 %v682
  %980 = vmatpush1.bf16.msra.mxu0 %v681
  %981 = vmatprep.subr.bf16.mxu0 %v680
  %982 = vmatpush1.bf16.msra.mxu0 %v679
  %983 = vmatprep.subr.bf16.mxu0 %v710
  %984 = vmatpush2.bf16.msra.mxu0 %v709
  %985 = vmatprep.subr.bf16.mxu0 %v708
  %986 = vmatpush2.bf16.msra.mxu0 %v707
  %987 = vmatprep.subr.bf16.mxu0 %v706
  %988 = vmatpush2.bf16.msra.mxu0 %v705
  %989 = vmatprep.subr.bf16.mxu0 %v704
  %990 = vmatpush2.bf16.msra.mxu0 %v703
  %991 = vmatprep.subr.bf16.mxu0 %v702
  %992 = vmatpush2.bf16.msra.mxu0 %v701
  %993 = vmatprep.subr.bf16.mxu0 %v700
  %994 = vmatpush2.bf16.msra.mxu0 %v699
  %995 = vmatprep.subr.bf16.mxu0 %v698
  %996 = vmatpush2.bf16.msra.mxu0 %v697
  %997 = vmatprep.subr.bf16.mxu0 %v696
  %998 = vmatpush2.bf16.msra.mxu0 %v695
  %999 = vmatprep.mubr.bf16.mxu0 %v212
  %1000 = vmatmul.mubr.bf16.gmra.mxu0 %v198
  %v1001 = vpop.f32.mrf.mxu0
  %v1002 = vadd.f32 %v166, %v1001
  %v1003 = vpop.f32.mrf.mxu0
  %v1004 = vadd.f32 %v170, %v1003
  %v1005 = vpop.f32.mrf.mxu0
  %v1006 = vpop.f32.mrf.mxu0
  %1007 = vdwg.mxu0
  %1008 = vmatprep.subr.bf16.mxu0 %v726
  %1009 = vmatpush1.bf16.msra.mxu0 %v725
  %1010 = vmatprep.subr.bf16.mxu0 %v724
  %1011 = vmatpush1.bf16.msra.mxu0 %v723
  %1012 = vmatprep.subr.bf16.mxu0 %v722
  %1013 = vmatpush1.bf16.msra.mxu0 %v721
  %1014 = vmatprep.subr.bf16.mxu0 %v720
  %1015 = vmatpush1.bf16.msra.mxu0 %v719
  %1016 = vmatprep.subr.bf16.mxu0 %v718
  %1017 = vmatpush1.bf16.msra.mxu0 %v717
  %1018 = vmatprep.subr.bf16.mxu0 %v716
  %1019 = vmatpush1.bf16.msra.mxu0 %v715
  %1020 = vmatprep.subr.bf16.mxu0 %v714
  %1021 = vmatpush1.bf16.msra.mxu0 %v713
  %1022 = vmatprep.subr.bf16.mxu0 %v712
  %1023 = vmatpush1.bf16.msra.mxu0 %v711
  %1024 = vmatprep.subr.bf16.mxu0 %v742
  %1025 = vmatpush2.bf16.msra.mxu0 %v741
  %1026 = vmatprep.subr.bf16.mxu0 %v740
  %1027 = vmatpush2.bf16.msra.mxu0 %v739
  %1028 = vmatprep.subr.bf16.mxu0 %v738
  %1029 = vmatpush2.bf16.msra.mxu0 %v737
  %1030 = vmatprep.subr.bf16.mxu0 %v736
  %1031 = vmatpush2.bf16.msra.mxu0 %v735
  %1032 = vmatprep.subr.bf16.mxu0 %v734
  %1033 = vmatpush2.bf16.msra.mxu0 %v733
  %1034 = vmatprep.subr.bf16.mxu0 %v732
  %1035 = vmatpush2.bf16.msra.mxu0 %v731
  %1036 = vmatprep.subr.bf16.mxu0 %v730
  %1037 = vmatpush2.bf16.msra.mxu0 %v729
  %1038 = vmatprep.subr.bf16.mxu0 %v728
  %1039 = vmatpush2.bf16.msra.mxu0 %v727
  %1040 = vmatprep.mubr.bf16.mxu0 %v222
  %1041 = vmatmul.mubr.bf16.gmra.mxu0 %v220
  %v1042 = vpop.f32.mrf.mxu0
  %v1043 = vadd.f32 %v1002, %v1042
  %v1044 = vpop.f32.mrf.mxu0
  %v1045 = vadd.f32 %v1004, %v1044
  %v1046 = vpop.f32.mrf.mxu0
  %v1047 = vpop.f32.mrf.mxu0
  %1048 = vdwg.mxu0
  %1049 = vmatprep.subr.bf16.mxu0 %v758
  %1050 = vmatpush1.bf16.msra.mxu0 %v757
  %1051 = vmatprep.subr.bf16.mxu0 %v756
  %1052 = vmatpush1.bf16.msra.mxu0 %v755
  %1053 = vmatprep.subr.bf16.mxu0 %v754
  %1054 = vmatpush1.bf16.msra.mxu0 %v753
  %1055 = vmatprep.subr.bf16.mxu0 %v752
  %1056 = vmatpush1.bf16.msra.mxu0 %v751
  %1057 = vmatprep.subr.bf16.mxu0 %v750
  %1058 = vmatpush1.bf16.msra.mxu0 %v749
  %1059 = vmatprep.subr.bf16.mxu0 %v748
  %1060 = vmatpush1.bf16.msra.mxu0 %v747
  %1061 = vmatprep.subr.bf16.mxu0 %v746
  %1062 = vmatpush1.bf16.msra.mxu0 %v745
  %1063 = vmatprep.subr.bf16.mxu0 %v744
  %1064 = vmatpush1.bf16.msra.mxu0 %v743
  %1065 = vmatprep.subr.bf16.mxu0 %v774
  %1066 = vmatpush2.bf16.msra.mxu0 %v773
  %1067 = vmatprep.subr.bf16.mxu0 %v772
  %1068 = vmatpush2.bf16.msra.mxu0 %v771
  %1069 = vmatprep.subr.bf16.mxu0 %v770
  %1070 = vmatpush2.bf16.msra.mxu0 %v769
  %1071 = vmatprep.subr.bf16.mxu0 %v768
  %1072 = vmatpush2.bf16.msra.mxu0 %v767
  %1073 = vmatprep.subr.bf16.mxu0 %v766
  %1074 = vmatpush2.bf16.msra.mxu0 %v765
  %1075 = vmatprep.subr.bf16.mxu0 %v764
  %1076 = vmatpush2.bf16.msra.mxu0 %v763
  %1077 = vmatprep.subr.bf16.mxu0 %v762
  %1078 = vmatpush2.bf16.msra.mxu0 %v761
  %1079 = vmatprep.subr.bf16.mxu0 %v760
  %1080 = vmatpush2.bf16.msra.mxu0 %v759
  %1081 = vmatprep.mubr.bf16.mxu0 %v219
  %1082 = vmatmul.mubr.bf16.gmra.mxu0 %v205
  %v1083 = vpop.f32.mrf.mxu0
  %v1084 = vadd.f32 %v1043, %v1083
  %v1085 = vpop.f32.mrf.mxu0
  %v1086 = vadd.f32 %v1045, %v1085
  %v1087 = vpop.f32.mrf.mxu0
  %v1088 = vpop.f32.mrf.mxu0
  %1089 = vdwg.mxu0
  %1090 = vmatprep.subr.bf16.mxu0 %v790
  %1091 = vmatpush1.bf16.msra.mxu0 %v789
  %1092 = vmatprep.subr.bf16.mxu0 %v788
  %1093 = vmatpush1.bf16.msra.mxu0 %v787
  %1094 = vmatprep.subr.bf16.mxu0 %v786
  %1095 = vmatpush1.bf16.msra.mxu0 %v785
  %1096 = vmatprep.subr.bf16.mxu0 %v784
  %1097 = vmatpush1.bf16.msra.mxu0 %v783
  %1098 = vmatprep.subr.bf16.mxu0 %v782
  %1099 = vmatpush1.bf16.msra.mxu0 %v781
  %1100 = vmatprep.subr.bf16.mxu0 %v780
  %1101 = vmatpush1.bf16.msra.mxu0 %v779
  %1102 = vmatprep.subr.bf16.mxu0 %v778
  %1103 = vmatpush1.bf16.msra.mxu0 %v777
  %1104 = vmatprep.subr.bf16.mxu0 %v776
  %1105 = vmatpush1.bf16.msra.mxu0 %v775
  %1106 = vmatprep.subr.bf16.mxu0 %v806
  %1107 = vmatpush2.bf16.msra.mxu0 %v805
  %1108 = vmatprep.subr.bf16.mxu0 %v804
  %1109 = vmatpush2.bf16.msra.mxu0 %v803
  %1110 = vmatprep.subr.bf16.mxu0 %v802
  %1111 = vmatpush2.bf16.msra.mxu0 %v801
  %1112 = vmatprep.subr.bf16.mxu0 %v800
  %1113 = vmatpush2.bf16.msra.mxu0 %v799
  %1114 = vmatprep.subr.bf16.mxu0 %v798
  %1115 = vmatpush2.bf16.msra.mxu0 %v797
  %1116 = vmatprep.subr.bf16.mxu0 %v796
  %1117 = vmatpush2.bf16.msra.mxu0 %v795
  %1118 = vmatprep.subr.bf16.mxu0 %v794
  %1119 = vmatpush2.bf16.msra.mxu0 %v793
  %1120 = vmatprep.subr.bf16.mxu0 %v792
  %1121 = vmatpush2.bf16.msra.mxu0 %v791
  %1122 = vmatprep.mubr.bf16.mxu0 %v223
  %1123 = vmatmul.mubr.bf16.gmra.mxu0 %v221
  %v1124 = vpop.f32.mrf.mxu0
  %v1125 = vadd.f32 %v1084, %v1124
  %v1126 = vpop.f32.mrf.mxu0
  %v1127 = vadd.f32 %v1086, %v1126
  %v1128 = vpop.f32.mrf.mxu0
  %v1129 = vpop.f32.mrf.mxu0
  %1130 = vdwg.mxu0
  %1131 = vmatprep.subr.bf16.mxu0 %v822
  %1132 = vmatpush1.bf16.msra.mxu0 %v821
  %1133 = vmatprep.subr.bf16.mxu0 %v820
  %1134 = vmatpush1.bf16.msra.mxu0 %v819
  %1135 = vmatprep.subr.bf16.mxu0 %v818
  %1136 = vmatpush1.bf16.msra.mxu0 %v817
  %1137 = vmatprep.subr.bf16.mxu0 %v816
  %1138 = vmatpush1.bf16.msra.mxu0 %v815
  %1139 = vmatprep.subr.bf16.mxu0 %v814
  %1140 = vmatpush1.bf16.msra.mxu0 %v813
  %1141 = vmatprep.subr.bf16.mxu0 %v812
  %1142 = vmatpush1.bf16.msra.mxu0 %v811
  %1143 = vmatprep.subr.bf16.mxu0 %v810
  %1144 = vmatpush1.bf16.msra.mxu0 %v809
  %1145 = vmatprep.subr.bf16.mxu0 %v808
  %1146 = vmatpush1.bf16.msra.mxu0 %v807
  %1147 = vmatprep.subr.bf16.mxu0 0
  %1148 = vmatpush2.bf16.msra.mxu0 0
  %1149 = vmatprep.subr.bf16.mxu0 0
  %1150 = vmatpush2.bf16.msra.mxu0 0
  %1151 = vmatprep.subr.bf16.mxu0 0
  %1152 = vmatpush2.bf16.msra.mxu0 0
  %1153 = vmatprep.subr.bf16.mxu0 0
  %1154 = vmatpush2.bf16.msra.mxu0 0
  %1155 = vmatprep.subr.bf16.mxu0 0
  %1156 = vmatpush2.bf16.msra.mxu0 0
  %1157 = vmatprep.subr.bf16.mxu0 0
  %1158 = vmatpush2.bf16.msra.mxu0 0
  %1159 = vmatprep.subr.bf16.mxu0 0
  %1160 = vmatpush2.bf16.msra.mxu0 0
  %1161 = vmatprep.subr.bf16.mxu0 0
  %1162 = vmatpush2.bf16.msra.mxu0 0
  %1163 = vmatprep.mubr.bf16.mxu0 0
  %1164 = vmatmul.mubr.bf16.gmra.mxu0 %v237
  %v1165 = vpop.f32.mrf.mxu0
  %v1166 = vadd.f32 %v1125, %v1165
  %v1167 = vpop.f32.mrf.mxu0
  %v1168 = vadd.f32 %v1127, %v1167
  %v1169 = vpop.f32.mrf.mxu0
  %v1170 = vpop.f32.mrf.mxu0
  %1171 = vdwg.mxu0
  %vm1172 = vcmp.gt.f32.partialorder %v1166, 0.0
  %vm1173 = vcmp.gt.f32.partialorder %v1168, 0.0
  %v1174 = vmul.f32 %v1166, 0.2
  %v1175 = vmul.f32 %v1168, 0.2
  %v1176 = vsel %vm1172, %v1166, %v1174
  %v1177 = vsel %vm1173, %v1168, %v1175
  %v1178 = vpack.c.bf16 %v1176, %v1176
  %v1179 = vpack.c.bf16 %v1177, %v1177
  %v1182 = vcombine.low %v1178, %v1179
  %v1184 = vunpack.c.l.s4 1966171168
  %v1185 = vunpack.c.0.s8 %v1184
  %v1186 = vlaneseq
  %v1187 = vshrl.u32 %v1186, 7
  %v1188 = vsub.s32 %v1185, %v1187
  %v1189 = vrot.slane %v1182, %v1188
  %v1191 = vunpack.c.l.s4 1966171168
  %v1192 = vunpack.c.0.s8 %v1191
  %v1193 = vlaneseq
  %v1194 = vshrl.u32 %v1193, 7
  %v1195 = vsub.s32 %v1192, %v1194
  %v1196 = vrot.slane %v1189, %v1195
  %1198 = vst [vmem:[%s3] sm:$0x3] %v1196
  // Predicated region
  $region14: #{discriminator_forward.8} parent=0 // pred_check
    _
  $region15: #{discriminator_forward.8} parent=0 // pred_check_branch
    %1200 = sbr.rel (0) target = $region17
  $region16: #{discriminator_forward.8} parent=0 // pred_region
    _
  $region17: #{discriminator_forward.8} parent=0 // pred_fallthru
    _
  // Predicated region
  $region18: #{discriminator_forward.8} parent=0 // pred_check
    _
  $region19: #{discriminator_forward.8} parent=0 // pred_check_branch
    %1202 = sbr.rel (0) target = $region21
  $region20: #{discriminator_forward.8} parent=0 // pred_region
    _
  $region21: #{discriminator_forward.8} parent=0 // pred_fallthru
    _

// kernel: discriminator_forward.9
$region0: #{discriminator_forward.9}
  #allocation0 [shape = 'u32[]', space=smem, size = 0x4, offset = 0x4, fixed_abs, tag = 'smem constant byte address 0x4 - core index']
  #allocation1 [shape = 'u32[144,128]{1,0:T(1,128)}', space=vmem, size = 0x12000, scoped, tag = 'internal scratch']
  #allocation2 [shape = 'f32[1,1]{1,0:T(1,128)S(1)}', space=vmem, size = 0x200, scoped, tag = 'scoped memory for discriminator_forward.9']
  %s0 = inlined_call_operand.vmem [shape: bf16[2,256], index: 0, kind: input, shape index: {}]
  %s1 = inlined_call_operand.vmem [shape: bf16[1,256], index: 1, kind: input, shape index: {}]
  %s2 = inlined_call_operand.<no memory space> [shape: f32[1,1], index: 2, kind: input, shape index: {}]
  %s3 = inlined_call_operand.hbm [shape: f32[1,2], index: 3, kind: output, shape index: {}]
  %s4 = sld [smem:[#allocation0]]
  $region22: #{discriminator_forward.9} parent=0
    _
  %s6 = ssub.s32 1, %s4
  %s7 = scalar_select 0, %s6, %s4
  %v8 = vstv %s2
  %9 = vst [vmem:[#allocation2] sm:$0x1] %v8
  $region1: #{discriminator_forward.9} parent=0
    #allocation3 [shape = 'u8[512]{0}', space=vmem, size = 0x400, scoped, tag = 'output window, operand 0, single buffered']
    #allocation4 [shape = 's32[1]{0}', space=sflag, size = 0x4, scoped, tag = 'scoped memory for discriminator_forward.9']
    %10 = vsyncpa [#allocation4], 0
    // Predicated region
    $region2: #{discriminator_forward.9} parent=1 // pred_check
      _
    $region3: #{discriminator_forward.9} parent=1 // pred_check_branch
      %12 = sbr.rel (0) target = $region5
    $region4: #{discriminator_forward.9} parent=1 // pred_region
      _
    $region5: #{discriminator_forward.9} parent=1 // pred_fallthru
      _
    // Predicated region
    $region6: #{discriminator_forward.9} parent=1 // pred_check
      _
    $region7: #{discriminator_forward.9} parent=1 // pred_check_branch
      %14 = sbr.rel (0) target = $region9
    $region8: #{discriminator_forward.9} parent=1 // pred_region
      _
    $region9: #{discriminator_forward.9} parent=1 // pred_fallthru
      _
    // Predicated region
    $region10: #{discriminator_forward.9} parent=1 // pred_check
      _
    $region11: #{discriminator_forward.9} parent=1 // pred_check_branch
      %16 = sbr.rel (0) target = $region13
    $region12: #{discriminator_forward.9} parent=1 // pred_region
      _
    $region13: #{discriminator_forward.9} parent=1 // pred_fallthru
      _
    %v18 = vld [vmem:[%s1] sm:$0x3]
    %v19 = vld [vmem:[%s0] sm:$0x3]
    %v20 = vld [vmem:[#allocation2] sm:$0x1]
    %22 = vset.pattern.permute.xlu0 0
    %23 = vperm.xlu0 %22, %v20
    %v24 = vpop.permute.xlu0 %23
    %v26 = vlaneseq
    %v27 = vshrl.u32 %v26, 7
    %v28 = vsub.s32 0, %v27
    %v29 = vrot.slane %v24, %v28
    %v32 = vunpack.c.l.s4 1966171168
    %v33 = vunpack.c.0.s8 %v32
    %v34 = vlaneseq
    %v35 = vshrl.u32 %v34, 7
    %v36 = vsub.s32 %v33, %v35
    %v37 = vrot.slane %v18, %v36
    %v38 = vcombine.high %v37, %v37
    %v40 = vunpack.c.l.s4 1966171168
    %v41 = vunpack.c.0.s8 %v40
    %v42 = vlaneseq
    %v43 = vshrl.u32 %v42, 7
    %v44 = vsub.s32 %v41, %v43
    %v45 = vrot.slane %v37, %v44
    %v47 = vunpack.c.l.s4 1966171168
    %v48 = vunpack.c.0.s8 %v47
    %v49 = vlaneseq
    %v50 = vshrl.u32 %v49, 7
    %v51 = vsub.s32 %v48, %v50
    %v52 = vrot.slane %v38, %v51
    %v57 = vunpack.c.l.s4 1966171168
    %v58 = vunpack.c.0.s8 %v57
    %v59 = vlaneseq
    %v60 = vshrl.u32 %v59, 7
    %v61 = vsub.s32 %v58, %v60
    %v62 = vrot.slane %v19, %v61
    %v63 = vcombine.high %v62, %v62
    %v65 = vunpack.c.l.s4 1966171168
    %v66 = vunpack.c.0.s8 %v65
    %v67 = vlaneseq
    %v68 = vshrl.u32 %v67, 7
    %v69 = vsub.s32 %v66, %v68
    %v70 = vrot.slane %v62, %v69
    %v72 = vunpack.c.l.s4 1966171168
    %v73 = vunpack.c.0.s8 %v72
    %v74 = vlaneseq
    %v75 = vshrl.u32 %v74, 7
    %v76 = vsub.s32 %v73, %v75
    %v77 = vrot.slane %v63, %v76
    %80 = vmatprep.subr.bf16.mxu0 0
    %81 = vmatpush1.bf16.xpose.msra.mxu0 0
    %82 = vmatprep.subr.bf16.mxu0 0
    %83 = vmatpush1.bf16.xpose.msra.mxu0 0
    %84 = vmatprep.subr.bf16.mxu0 0
    %85 = vmatpush1.bf16.xpose.msra.mxu0 0
    %86 = vmatprep.subr.bf16.mxu0 0
    %87 = vmatpush1.bf16.xpose.msra.mxu0 0
    %88 = vmatprep.subr.bf16.mxu0 0
    %89 = vmatpush1.bf16.xpose.msra.mxu0 0
    %90 = vmatprep.subr.bf16.mxu0 0
    %91 = vmatpush1.bf16.xpose.msra.mxu0 0
    %92 = vmatprep.subr.bf16.mxu0 0
    %93 = vmatpush1.bf16.xpose.msra.mxu0 0
    %94 = vmatprep.subr.bf16.mxu0 %v77
    %95 = vmatpush1.bf16.xpose.msra.mxu0 %v70
    %96 = vmatprep.subr.bf16.mxu0 0
    %97 = vmatpush2.bf16.xpose.msra.mxu0 0
    %98 = vmatprep.subr.bf16.mxu0 0
    %99 = vmatpush2.bf16.xpose.msra.mxu0 0
    %100 = vmatprep.subr.bf16.mxu0 0
    %101 = vmatpush2.bf16.xpose.msra.mxu0 0
    %102 = vmatprep.subr.bf16.mxu0 0
    %103 = vmatpush2.bf16.xpose.msra.mxu0 0
    %104 = vmatprep.subr.bf16.mxu0 0
    %105 = vmatpush2.bf16.xpose.msra.mxu0 0
    %106 = vmatprep.subr.bf16.mxu0 0
    %107 = vmatpush2.bf16.xpose.msra.mxu0 0
    %108 = vmatprep.subr.bf16.mxu0 0
    %109 = vmatpush2.bf16.xpose.msra.mxu0 0
    %110 = vmatprep.subr.bf16.mxu0 0
    %111 = vmatpush2.bf16.xpose.msra.mxu0 0
    %112 = vmatprep.mubr.bf16.mxu0 %v52
    %113 = vmatmul.mubr.bf16.gmra.mxu0 %v45
    %v114 = vpop.f32.mrf.mxu0
    %v115 = vadd.f32 %v29, %v114
    %v116 = vpop.f32.mrf.mxu0
    %v117 = vpop.f32.mrf.mxu0
    %v118 = vpop.f32.mrf.mxu0
    %119 = vdwg.mxu0
    %v120 = vxor.u32 %v115, 2147483648
    %v121 = vmul.f32 %v120, 1.442695
    %v122 = vpow.pop %v121
    %v123 = vadd.f32 %v122, 1.0
    %v124 = vrcp.pop %v123
    %v125 = vmul.f32 1.0, %v124
    %vm126 = vcmask 8192
    %127 = vst.msk [vmem:[#allocation3] sm:$0x1] %vm126, %v125
    // Predicated region
    $region14: #{discriminator_forward.9} parent=1 // pred_check
      _
    $region15: #{discriminator_forward.9} parent=1 // pred_check_branch
      %129 = sbr.rel (0) target = $region17
    $region16: #{discriminator_forward.9} parent=1 // pred_region
      %s131 = ssub.s32 16, 16
      %132 = vsyncadd [#allocation4], %s131
      %s134 = sshll.u32 [#allocation3], 4
      %s135 = int_to_ptr.vmem [resolvable:$true] %s134
      %137 = dma.vmem_to_hbm [thread:$0]  %s135, 16, %s3, [#allocation4]
    $region17: #{discriminator_forward.9} parent=1 // pred_fallthru
      _
    // Predicated region
    $region18: #{discriminator_forward.9} parent=1 // pred_check
      _
    $region19: #{discriminator_forward.9} parent=1 // pred_check_branch
      %139 = sbr.rel (0) target = $region21
    $region20: #{discriminator_forward.9} parent=1 // pred_region
      %140 = dma.done [#allocation4], 16
    $region21: #{discriminator_forward.9} parent=1 // pred_fallthru
      _
    %141 = vsyncpa [#allocation4], 1

</llo_original>
